<compile_context>
chip_gen: v5e
topology: v5e:2x2
jax: 0.10.0
libtpu: 0.0.40
codegen_flags: <defaults>
</compile_context>

<pallas_src>
import jax
import jax.numpy as jnp
from jax.experimental import pallas as pl
from jax.experimental.pallas import tpu as pltpu

IN_DIM = 28 * 28 * 1   # 784 (full last dim of x; no K padding)
HID_DIM = 512
OUT_DIM = 10
OUT_PAD = 128          # lane-dense output block (unmasked vst)


def mlp_kernel(x_ref, w1_ref, b1_ref, w2_ref, b2_ref, w3_ref, b3_ref, o_ref):
    # Layer 1: Linear(784 -> 512) + ReLU.
    # f32 -> bf16 cast of the activation tile happens here (VPU pack, hidden
    # under the MXU) instead of a separate wrapper pass over x.
    x = x_ref[...].astype(jnp.bfloat16)
    h = jnp.dot(x, w1_ref[...], preferred_element_type=jnp.float32)
    h = jnp.maximum(h + b1_ref[...], 0.0)
    # dropout1: identity (eval semantics)

    # Layer 2: Linear(512 -> 512) + ReLU
    h = jnp.dot(h.astype(jnp.bfloat16), w2_ref[...],
                preferred_element_type=jnp.float32)
    h = jnp.maximum(h + b2_ref[...], 0.0)
    # dropout2: identity (eval semantics)

    # Layer 3: Linear(512 -> 10, lane-padded to 128) + ReLU
    h = jnp.dot(h.astype(jnp.bfloat16), w3_ref[...],
                preferred_element_type=jnp.float32)
    o_ref[...] = jnp.maximum(h + b3_ref[...], 0.0).astype(o_ref.dtype)


def prepare_params(params):
    """One-time packing of the Linear params; reuse the result across calls."""
    w1, b1, w2, b2, w3, b3 = params
    w1b = jnp.asarray(w1, jnp.float32).astype(jnp.bfloat16)          # [784, 512]
    w2b = jnp.asarray(w2, jnp.float32).astype(jnp.bfloat16)          # [512, 512]
    w3p = jnp.zeros((HID_DIM, OUT_PAD), jnp.bfloat16)
    w3p = w3p.at[:, :OUT_DIM].set(jnp.asarray(w3, jnp.float32).astype(jnp.bfloat16))
    b1f = jnp.asarray(b1, jnp.float32).reshape(1, HID_DIM)
    b2f = jnp.asarray(b2, jnp.float32).reshape(1, HID_DIM)
    b3p = jnp.zeros((1, OUT_PAD), jnp.float32)
    b3p = b3p.at[:, :OUT_DIM].set(jnp.asarray(b3, jnp.float32).reshape(1, OUT_DIM))
    return (w1b, b1f, w2b, b2f, w3p, b3p)


def _round_up(n, m):
    return -(-n // m) * m


def _pick_bm(B, *, bm_max=512, min_steps=4):
    """Batch tile: >=min_steps grid steps when B allows (v7x pipelining),
    capped at bm_max to stay amply within VMEM while amortizing step overhead."""
    B8 = _round_up(B, 8)
    if B8 <= 128:
        return B8
    bm = _round_up(-(-B8 // min_steps), 128)
    return max(128, min(bm_max, bm))


def multi_perceptron(x, packed_params, *, bm=None):
    """x: [B, 784] float32 -> [B, 10] float32 (forward of MultiPerceptron).

    `packed_params` must come from prepare_params() (hoisted, call-invariant).
    """
    w1b, b1f, w2b, b2f, w3p, b3p = packed_params
    B = x.shape[0]
    if bm is None:
        bm = _pick_bm(B)
    bm = min(bm, _round_up(B, 8))
    B_pad = _round_up(B, bm)
    if B_pad != B:
        x = jnp.pad(x, ((0, B_pad - B), (0, 0)))   # batch pad only; no lane pad

    grid = (B_pad // bm,)

    flops = 2 * B_pad * (IN_DIM * HID_DIM + HID_DIM * HID_DIM + HID_DIM * OUT_PAD)
    bytes_accessed = (
        B_pad * IN_DIM * 4
        + (w1b.size + w2b.size + w3p.size) * 2
        + (b1f.size + b2f.size + b3p.size) * 4
        + B_pad * OUT_PAD * 4
    )

    # VMEM budget: double-buffered x/out tiles + resident (double-buffered)
    # weights/biases + intermediate headroom.
    vmem_est = (
        2 * bm * IN_DIM * 4
        + 2 * bm * OUT_PAD * 4
        + 2 * (w1b.size + w2b.size + w3p.size) * 2
        + 2 * (b1f.size + b2f.size + b3p.size) * 4
        + 3 * bm * HID_DIM * 4
    )
    vmem_limit = int(min(max(vmem_est * 1.25, 16 * 1024 * 1024), 32 * 1024 * 1024))

    out = pl.pallas_call(
        mlp_kernel,
        out_shape=jax.ShapeDtypeStruct((B_pad, OUT_PAD), jnp.float32),
        grid_spec=pltpu.PrefetchScalarGridSpec(
            num_scalar_prefetch=0,
            grid=grid,
            in_specs=[
                # activations: stream per batch tile (784 == full last dim)
                pl.BlockSpec((bm, IN_DIM), lambda i: (i, 0)),
                # weights / biases: constant block index -> resident in VMEM
                pl.BlockSpec((IN_DIM, HID_DIM), lambda i: (0, 0)),
                pl.BlockSpec((1, HID_DIM), lambda i: (0, 0)),
                pl.BlockSpec((HID_DIM, HID_DIM), lambda i: (0, 0)),
                pl.BlockSpec((1, HID_DIM), lambda i: (0, 0)),
                pl.BlockSpec((HID_DIM, OUT_PAD), lambda i: (0, 0)),
                pl.BlockSpec((1, OUT_PAD), lambda i: (0, 0)),
            ],
            out_specs=pl.BlockSpec((bm, OUT_PAD), lambda i: (i, 0)),
        ),
        compiler_params=pltpu.CompilerParams(
            dimension_semantics=("parallel",),
            vmem_limit_bytes=vmem_limit,
        ),
        cost_estimate=pl.CostEstimate(
            flops=flops, transcendentals=0, bytes_accessed=bytes_accessed,
        ),
    )(x, w1b, b1f, w2b, b2f, w3p, b3p)

    # strip batch + lane padding
    return out[:B, :OUT_DIM]


def init_params(key):
    """Deterministic init mimicking nn.Linear's U(-1/sqrt(fan_in), +1/sqrt(fan_in))."""
    def linear(key, fan_in, fan_out):
        kw, kb = jax.random.split(key)
        bound = 1.0 / jnp.sqrt(fan_in)
        # stored as [in, out] so the kernel computes x @ W (== PyTorch x @ W.T)
        w = jax.random.uniform(kw, (fan_in, fan_out), jnp.float32, -bound, bound)
        b = jax.random.uniform(kb, (fan_out,), jnp.float32, -bound, bound)
        return w, b

    k1, k2, k3 = jax.random.split(key, 3)
    w1, b1 = linear(k1, IN_DIM, HID_DIM)
    w2, b2 = linear(k2, HID_DIM, HID_DIM)
    w3, b3 = linear(k3, HID_DIM, OUT_DIM)
    return (w1, b1, w2, b2, w3, b3)


if __name__ == "__main__":
    key = jax.random.PRNGKey(0)
    kx, kp = jax.random.split(key)

    # Small, module-consistent shapes: batch=32 rows of flattened 28x28 images.
    B = 32
    x = jax.random.normal(kx, (B, IN_DIM), jnp.float32)
    params = init_params(kp)

    # One-time packing (hoisted out of the per-call path).
    packed = prepare_params(params)

    out = multi_perceptron(x, packed)
    out = jax.block_until_ready(out)

    w1, b1, w2, b2, w3, b3 = params

    # Reference 1: matches kernel numerics (bf16 operands, f32 accumulation).
    xb = x.astype(jnp.bfloat16)
    h = jnp.maximum(jnp.dot(xb, w1.astype(jnp.bfloat16),
                            preferred_element_type=jnp.float32) + b1, 0.0)
    h = jnp.maximum(jnp.dot(h.astype(jnp.bfloat16), w2.astype(jnp.bfloat16),
                            preferred_element_type=jnp.float32) + b2, 0.0)
    ref_bf16 = jnp.maximum(jnp.dot(h.astype(jnp.bfloat16), w3.astype(jnp.bfloat16),
                                   preferred_element_type=jnp.float32) + b3, 0.0)

    # Reference 2: pure f32 forward (sanity that semantics are preserved).
    r = jnp.maximum(x @ w1 + b1, 0.0)
    r = jnp.maximum(r @ w2 + b2, 0.0)
    ref_f32 = jnp.maximum(r @ w3 + b3, 0.0)

    assert out.shape == (B, OUT_DIM) and out.dtype == jnp.float32
    assert bool(jnp.all(out >= 0.0))
    assert bool(jnp.allclose(out, ref_bf16, atol=1e-3, rtol=1e-3))
    assert bool(jnp.allclose(out, ref_f32, atol=3e-2, rtol=3e-2))

    print("KERNEL_OK")
</pallas_src>

<mosaic_0001>
module attributes {stable_mosaic.version = 11 : i64} {
  func.func @mlp_kernel(%arg0: i32, %arg1: memref<32x784xf32, #tpu.memory_space<vmem>>, %arg2: memref<784x512xbf16, #tpu.memory_space<vmem>>, %arg3: memref<1x512xf32, #tpu.memory_space<vmem>>, %arg4: memref<512x512xbf16, #tpu.memory_space<vmem>>, %arg5: memref<1x512xf32, #tpu.memory_space<vmem>>, %arg6: memref<512x128xbf16, #tpu.memory_space<vmem>>, %arg7: memref<1x128xf32, #tpu.memory_space<vmem>>, %arg8: memref<32x128xf32, #tpu.memory_space<vmem>>) attributes {dimension_semantics = [#tpu.dimension_semantics<parallel>], iteration_bounds = array<i64: 1>, scalar_prefetch = 0 : i64, scratch_operands = 0 : i64, tpu.core_type = #tpu.core_type<tc>, window_params = [{transform_indices = @transform_0, window_bounds = array<i64: 32, 784>}, {pipeline_mode = #tpu.pipeline_mode<synchronous>, transform_indices = @transform_1, window_bounds = array<i64: 784, 512>}, {pipeline_mode = #tpu.pipeline_mode<synchronous>, transform_indices = @transform_2, window_bounds = array<i64: 1, 512>}, {pipeline_mode = #tpu.pipeline_mode<synchronous>, transform_indices = @transform_3, window_bounds = array<i64: 512, 512>}, {pipeline_mode = #tpu.pipeline_mode<synchronous>, transform_indices = @transform_4, window_bounds = array<i64: 1, 512>}, {pipeline_mode = #tpu.pipeline_mode<synchronous>, transform_indices = @transform_5, window_bounds = array<i64: 512, 128>}, {pipeline_mode = #tpu.pipeline_mode<synchronous>, transform_indices = @transform_6, window_bounds = array<i64: 1, 128>}, {transform_indices = @transform_7, window_bounds = array<i64: 32, 128>}]} {
    %c0 = arith.constant 0 : index
    %c0_0 = arith.constant 0 : index
    %0 = vector.load %arg1[%c0, %c0_0] : memref<32x784xf32, #tpu.memory_space<vmem>>, vector<32x784xf32>
    %1 = arith.truncf %0 : vector<32x784xf32> to vector<32x784xbf16>
    %c0_1 = arith.constant 0 : index
    %c0_2 = arith.constant 0 : index
    %2 = vector.load %arg2[%c0_1, %c0_2] : memref<784x512xbf16, #tpu.memory_space<vmem>>, vector<784x512xbf16>
    %cst = arith.constant dense<0.000000e+00> : vector<32x512xf32>
    %3 = tpu.matmul %1, %2, %cst {dimension_numbers = #tpu.dot_dimension_numbers<[1], [0], [0], [1], [0, 0, 1, 1], [], []>} : vector<32x784xbf16>, vector<784x512xbf16>, vector<32x512xf32> -> vector<32x512xf32>
    %c0_3 = arith.constant 0 : index
    %c0_4 = arith.constant 0 : index
    %4 = vector.load %arg3[%c0_3, %c0_4] : memref<1x512xf32, #tpu.memory_space<vmem>>, vector<1x512xf32>
    %5 = vector.broadcast %4 : vector<1x512xf32> to vector<32x512xf32>
    %6 = arith.addf %3, %5 : vector<32x512xf32>
    %cst_5 = arith.constant 0.000000e+00 : f32
    %7 = vector.broadcast %cst_5 : f32 to vector<32x512xf32>
    %8 = arith.maximumf %6, %7 : vector<32x512xf32>
    %9 = arith.truncf %8 : vector<32x512xf32> to vector<32x512xbf16>
    %c0_6 = arith.constant 0 : index
    %c0_7 = arith.constant 0 : index
    %10 = vector.load %arg4[%c0_6, %c0_7] : memref<512x512xbf16, #tpu.memory_space<vmem>>, vector<512x512xbf16>
    %cst_8 = arith.constant dense<0.000000e+00> : vector<32x512xf32>
    %11 = tpu.matmul %9, %10, %cst_8 {dimension_numbers = #tpu.dot_dimension_numbers<[1], [0], [0], [1], [0, 0, 1, 1], [], []>} : vector<32x512xbf16>, vector<512x512xbf16>, vector<32x512xf32> -> vector<32x512xf32>
    %c0_9 = arith.constant 0 : index
    %c0_10 = arith.constant 0 : index
    %12 = vector.load %arg5[%c0_9, %c0_10] : memref<1x512xf32, #tpu.memory_space<vmem>>, vector<1x512xf32>
    %13 = vector.broadcast %12 : vector<1x512xf32> to vector<32x512xf32>
    %14 = arith.addf %11, %13 : vector<32x512xf32>
    %cst_11 = arith.constant 0.000000e+00 : f32
    %15 = vector.broadcast %cst_11 : f32 to vector<32x512xf32>
    %16 = arith.maximumf %14, %15 : vector<32x512xf32>
    %17 = arith.truncf %16 : vector<32x512xf32> to vector<32x512xbf16>
    %c0_12 = arith.constant 0 : index
    %c0_13 = arith.constant 0 : index
    %18 = vector.load %arg6[%c0_12, %c0_13] : memref<512x128xbf16, #tpu.memory_space<vmem>>, vector<512x128xbf16>
    %cst_14 = arith.constant dense<0.000000e+00> : vector<32x128xf32>
    %19 = tpu.matmul %17, %18, %cst_14 {dimension_numbers = #tpu.dot_dimension_numbers<[1], [0], [0], [1], [0, 0, 1, 1], [], []>} : vector<32x512xbf16>, vector<512x128xbf16>, vector<32x128xf32> -> vector<32x128xf32>
    %c0_15 = arith.constant 0 : index
    %c0_16 = arith.constant 0 : index
    %20 = vector.load %arg7[%c0_15, %c0_16] : memref<1x128xf32, #tpu.memory_space<vmem>>, vector<1x128xf32>
    %21 = vector.broadcast %20 : vector<1x128xf32> to vector<32x128xf32>
    %22 = arith.addf %19, %21 : vector<32x128xf32>
    %cst_17 = arith.constant 0.000000e+00 : f32
    %23 = vector.broadcast %cst_17 : f32 to vector<32x128xf32>
    %24 = arith.maximumf %22, %23 : vector<32x128xf32>
    %c0_18 = arith.constant 0 : index
    %c0_19 = arith.constant 0 : index
    %25 = vector.load %arg8[%c0_18, %c0_19] : memref<32x128xf32, #tpu.memory_space<vmem>>, vector<32x128xf32>
    tpu.vector_store %arg8[%c0_18, %c0_19], %24 {strides = array<i32>} : memref<32x128xf32, #tpu.memory_space<vmem>>, vector<32x128xf32>,
    return
  }
  func.func @transform_0(%arg0: i32) -> (i32, i32) {
    %c0_i32 = arith.constant 0 : i32
    %c0_i32_0 = arith.constant 0 : i32
    return %arg0, %c0_i32 : i32, i32
  }
  func.func @transform_1(%arg0: i32) -> (i32, i32) {
    %c0_i32 = arith.constant 0 : i32
    %c0_i32_0 = arith.constant 0 : i32
    %c0_i32_1 = arith.constant 0 : i32
    return %c0_i32, %c0_i32_0 : i32, i32
  }
  func.func @transform_2(%arg0: i32) -> (i32, i32) {
    %c0_i32 = arith.constant 0 : i32
    %c0_i32_0 = arith.constant 0 : i32
    %c0_i32_1 = arith.constant 0 : i32
    return %c0_i32, %c0_i32_0 : i32, i32
  }
  func.func @transform_3(%arg0: i32) -> (i32, i32) {
    %c0_i32 = arith.constant 0 : i32
    %c0_i32_0 = arith.constant 0 : i32
    %c0_i32_1 = arith.constant 0 : i32
    return %c0_i32, %c0_i32_0 : i32, i32
  }
  func.func @transform_4(%arg0: i32) -> (i32, i32) {
    %c0_i32 = arith.constant 0 : i32
    %c0_i32_0 = arith.constant 0 : i32
    %c0_i32_1 = arith.constant 0 : i32
    return %c0_i32, %c0_i32_0 : i32, i32
  }
  func.func @transform_5(%arg0: i32) -> (i32, i32) {
    %c0_i32 = arith.constant 0 : i32
    %c0_i32_0 = arith.constant 0 : i32
    %c0_i32_1 = arith.constant 0 : i32
    return %c0_i32, %c0_i32_0 : i32, i32
  }
  func.func @transform_6(%arg0: i32) -> (i32, i32) {
    %c0_i32 = arith.constant 0 : i32
    %c0_i32_0 = arith.constant 0 : i32
    %c0_i32_1 = arith.constant 0 : i32
    return %c0_i32, %c0_i32_0 : i32, i32
  }
  func.func @transform_7(%arg0: i32) -> (i32, i32) {
    %c0_i32 = arith.constant 0 : i32
    %c0_i32_0 = arith.constant 0 : i32
    return %arg0, %c0_i32 : i32, i32
  }
}

</mosaic_0001>

<llo_original>
// kernel: tpu_custom_call.1
$region0: #{tpu_custom_call.1}
  #allocation0 [shape = 'u32[]', space=smem, size = 0x4, offset = 0x4, fixed_abs, tag = 'smem constant byte address 0x4 - core index']
  #allocation1 [shape = 'u32[72,128]{1,0:T(1,128)}', space=vmem, size = 0x9000, scoped, tag = 'internal scratch']
  %s0 = inlined_call_operand.hbm [shape: f32[32,784], index: 0, kind: input, shape index: {}]
  %s1 = inlined_call_operand.hbm [shape: bf16[784,512], index: 1, kind: input, shape index: {}]
  %s2 = inlined_call_operand.hbm [shape: f32[1,512], index: 2, kind: input, shape index: {}]
  %s3 = inlined_call_operand.hbm [shape: bf16[512,512], index: 3, kind: input, shape index: {}]
  %s4 = inlined_call_operand.hbm [shape: f32[1,512], index: 4, kind: input, shape index: {}]
  %s5 = inlined_call_operand.hbm [shape: bf16[512,128], index: 5, kind: input, shape index: {}]
  %s6 = inlined_call_operand.vmem [shape: f32[1,128], index: 6, kind: input, shape index: {}]
  %s7 = inlined_call_operand.hbm [shape: f32[32,128], index: 7, kind: output, shape index: {}]
  %s8 = sld [smem:[#allocation0]]
  $region62: #{tpu_custom_call.1} parent=0
    _
  %s10 = ssub.s32 1, %s8
  %s11 = scalar_select 0, %s10, %s8
  $region1: #{tpu_custom_call.1} parent=0
    #allocation2 [shape = 'u8[114688]{0}', space=vmem, size = 0x1c000, scoped, tag = 'input window, operand 0, single buffered']
    #allocation3 [shape = 's32[1]{0}', space=sflag, size = 0x4, scoped, tag = 'scoped memory for tpu_custom_call.1']
    #allocation4 [shape = 's32[1]{0}', space=sflag, size = 0x4, scoped, tag = 'scoped memory for tpu_custom_call.1']
    #allocation5 [shape = 'u8[802816]{0}', space=vmem, size = 0xc4000, scoped, tag = 'input window, operand 1, single buffered']
    #allocation6 [shape = 's32[1]{0}', space=sflag, size = 0x4, scoped, tag = 'scoped memory for tpu_custom_call.1']
    #allocation7 [shape = 'u8[2048]{0}', space=vmem, size = 0x800, scoped, tag = 'input window, operand 2, single buffered']
    #allocation8 [shape = 'u8[524288]{0}', space=vmem, size = 0x80000, scoped, tag = 'input window, operand 3, single buffered']
    #allocation9 [shape = 's32[1]{0}', space=sflag, size = 0x4, scoped, tag = 'scoped memory for tpu_custom_call.1']
    #allocation10 [shape = 'u8[2048]{0}', space=vmem, size = 0x800, scoped, tag = 'input window, operand 4, single buffered']
    #allocation11 [shape = 'u8[131072]{0}', space=vmem, size = 0x20000, scoped, tag = 'input window, operand 5, single buffered']
    #allocation12 [shape = 's32[1]{0}', space=sflag, size = 0x4, scoped, tag = 'scoped memory for tpu_custom_call.1']
    #allocation13 [shape = 'u8[16384]{0}', space=vmem, size = 0x4000, scoped, tag = 'output window, operand 0, single buffered']
    %12 = vsyncpa [#allocation3], 0
    %13 = vsyncpa [#allocation6], 0
    %14 = vsyncpa [#allocation9], 0
    %15 = vsyncpa [#allocation12], 0
    %16 = vsyncpa [#allocation4], 0
    // Predicated region
    $region2: #{tpu_custom_call.1} parent=1 // pred_check
      _
    $region3: #{tpu_custom_call.1} parent=1 // pred_check_branch
      %18 = sbr.rel (0) target = $region5
    $region4: #{tpu_custom_call.1} parent=1 // pred_region
      %20 = vsyncadd [#allocation3], 0
      %s21 = sshll.u32 %s0, 4
      %s22 = int_to_ptr.hbm [resolvable:$true] %s21
      %s23 = sshll.u32 [#allocation2], 4
      %s24 = int_to_ptr.vmem [resolvable:$true] %s23
      %29 = dma.hbm_to_vmem [thread:$0]  %s22, 3584, %s24, [#allocation3], 896, 896, 56
    $region5: #{tpu_custom_call.1} parent=1 // pred_fallthru
      _
    // Predicated region
    $region6: #{tpu_custom_call.1} parent=1 // pred_check
      _
    $region7: #{tpu_custom_call.1} parent=1 // pred_check_branch
      %31 = sbr.rel (0) target = $region9
    $region8: #{tpu_custom_call.1} parent=1 // pred_region
      %33 = vsyncadd [#allocation6], 0
      %s34 = sshll.u32 %s1, 4
      %s35 = int_to_ptr.hbm [resolvable:$true] %s34
      %s36 = sshll.u32 [#allocation5], 4
      %s37 = int_to_ptr.vmem [resolvable:$true] %s36
      %42 = dma.hbm_to_vmem [thread:$0]  %s35, 25088, %s37, [#allocation6], 256, 256, 16
    $region9: #{tpu_custom_call.1} parent=1 // pred_fallthru
      _
    // Predicated region
    $region10: #{tpu_custom_call.1} parent=1 // pred_check
      _
    $region11: #{tpu_custom_call.1} parent=1 // pred_check_branch
      %44 = sbr.rel (0) target = $region13
    $region12: #{tpu_custom_call.1} parent=1 // pred_region
      %46 = vsyncadd [#allocation6], 0
      %s48 = sshll.u32 %s2, 4
      %s49 = int_to_ptr.hbm [resolvable:$true] %s48
      %s50 = sshll.u32 [#allocation7], 4
      %s51 = int_to_ptr.vmem [resolvable:$true] %s50
      %53 = dma.hbm_to_vmem [thread:$0]  %s49, 64, %s51, [#allocation6]
    $region13: #{tpu_custom_call.1} parent=1 // pred_fallthru
      _
    // Predicated region
    $region14: #{tpu_custom_call.1} parent=1 // pred_check
      _
    $region15: #{tpu_custom_call.1} parent=1 // pred_check_branch
      %55 = sbr.rel (0) target = $region17
    $region16: #{tpu_custom_call.1} parent=1 // pred_region
      %57 = vsyncadd [#allocation9], 0
      %s58 = sshll.u32 %s3, 4
      %s59 = int_to_ptr.hbm [resolvable:$true] %s58
      %s60 = sshll.u32 [#allocation8], 4
      %s61 = int_to_ptr.vmem [resolvable:$true] %s60
      %66 = dma.hbm_to_vmem [thread:$0]  %s59, 16384, %s61, [#allocation9], 256, 256, 16
    $region17: #{tpu_custom_call.1} parent=1 // pred_fallthru
      _
    // Predicated region
    $region18: #{tpu_custom_call.1} parent=1 // pred_check
      _
    $region19: #{tpu_custom_call.1} parent=1 // pred_check_branch
      %68 = sbr.rel (0) target = $region21
    $region20: #{tpu_custom_call.1} parent=1 // pred_region
      %70 = vsyncadd [#allocation9], 0
      %s72 = sshll.u32 %s4, 4
      %s73 = int_to_ptr.hbm [resolvable:$true] %s72
      %s74 = sshll.u32 [#allocation10], 4
      %s75 = int_to_ptr.vmem [resolvable:$true] %s74
      %77 = dma.hbm_to_vmem [thread:$0]  %s73, 64, %s75, [#allocation9]
    $region21: #{tpu_custom_call.1} parent=1 // pred_fallthru
      _
    // Predicated region
    $region22: #{tpu_custom_call.1} parent=1 // pred_check
      _
    $region23: #{tpu_custom_call.1} parent=1 // pred_check_branch
      %79 = sbr.rel (0) target = $region25
    $region24: #{tpu_custom_call.1} parent=1 // pred_region
      %81 = vsyncadd [#allocation12], 0
      %s82 = sshll.u32 %s5, 4
      %s83 = int_to_ptr.hbm [resolvable:$true] %s82
      %s84 = sshll.u32 [#allocation11], 4
      %s85 = int_to_ptr.vmem [resolvable:$true] %s84
      %90 = dma.hbm_to_vmem [thread:$0]  %s83, 4096, %s85, [#allocation12], 64, 64, 4
    $region25: #{tpu_custom_call.1} parent=1 // pred_fallthru
      _
    // Predicated region
    $region26: #{tpu_custom_call.1} parent=1 // pred_check
      _
    $region27: #{tpu_custom_call.1} parent=1 // pred_check_branch
      %92 = sbr.rel (0) target = $region29
    $region28: #{tpu_custom_call.1} parent=1 // pred_region
      _
    $region29: #{tpu_custom_call.1} parent=1 // pred_fallthru
      _
    // Predicated region
    $region30: #{tpu_custom_call.1} parent=1 // pred_check
      _
    $region31: #{tpu_custom_call.1} parent=1 // pred_check_branch
      %94 = sbr.rel (0) target = $region33
    $region32: #{tpu_custom_call.1} parent=1 // pred_region
      %96 = dma.done [#allocation3], 3584
    $region33: #{tpu_custom_call.1} parent=1 // pred_fallthru
      _
    // Predicated region
    $region34: #{tpu_custom_call.1} parent=1 // pred_check
      _
    $region35: #{tpu_custom_call.1} parent=1 // pred_check_branch
      %98 = sbr.rel (0) target = $region37
    $region36: #{tpu_custom_call.1} parent=1 // pred_region
      %100 = dma.done [#allocation6], 25088
    $region37: #{tpu_custom_call.1} parent=1 // pred_fallthru
      _
    // Predicated region
    $region38: #{tpu_custom_call.1} parent=1 // pred_check
      _
    $region39: #{tpu_custom_call.1} parent=1 // pred_check_branch
      %102 = sbr.rel (0) target = $region41
    $region40: #{tpu_custom_call.1} parent=1 // pred_region
      %104 = dma.done [#allocation6], 64
    $region41: #{tpu_custom_call.1} parent=1 // pred_fallthru
      _
    // Predicated region
    $region42: #{tpu_custom_call.1} parent=1 // pred_check
      _
    $region43: #{tpu_custom_call.1} parent=1 // pred_check_branch
      %106 = sbr.rel (0) target = $region45
    $region44: #{tpu_custom_call.1} parent=1 // pred_region
      %108 = dma.done [#allocation9], 16384
    $region45: #{tpu_custom_call.1} parent=1 // pred_fallthru
      _
    // Predicated region
    $region46: #{tpu_custom_call.1} parent=1 // pred_check
      _
    $region47: #{tpu_custom_call.1} parent=1 // pred_check_branch
      %110 = sbr.rel (0) target = $region49
    $region48: #{tpu_custom_call.1} parent=1 // pred_region
      %112 = dma.done [#allocation9], 64
    $region49: #{tpu_custom_call.1} parent=1 // pred_fallthru
      _
    // Predicated region
    $region50: #{tpu_custom_call.1} parent=1 // pred_check
      _
    $region51: #{tpu_custom_call.1} parent=1 // pred_check_branch
      %114 = sbr.rel (0) target = $region53
    $region52: #{tpu_custom_call.1} parent=1 // pred_region
      %116 = dma.done [#allocation12], 4096
    $region53: #{tpu_custom_call.1} parent=1 // pred_fallthru
      _
    %v118 = vld [vmem:[#allocation2] sm:$0xff]
    %v119 = vld [vmem:[#allocation2 + $0x8] sm:$0xff]
    %v120 = vld [vmem:[#allocation2 + $0x10] sm:$0xff]
    %v121 = vld [vmem:[#allocation2 + $0x18] sm:$0xff]
    %v122 = vld [vmem:[#allocation2 + $0x20] sm:$0xff]
    %v123 = vld [vmem:[#allocation2 + $0x28] sm:$0xff]
    %v124 = vld [vmem:[#allocation2 + $0x30] sm:$0xff]
    %v125 = vld [vmem:[#allocation2 + $0x38] sm:$0xff]
    %v126 = vld [vmem:[#allocation2 + $0x40] sm:$0xff]
    %v127 = vld [vmem:[#allocation2 + $0x48] sm:$0xff]
    %v128 = vld [vmem:[#allocation2 + $0x50] sm:$0xff]
    %v129 = vld [vmem:[#allocation2 + $0x58] sm:$0xff]
    %v130 = vld [vmem:[#allocation2 + $0x60] sm:$0xff]
    %v131 = vld [vmem:[#allocation2 + $0x68] sm:$0xff]
    %v132 = vld [vmem:[#allocation2 + $0x70] sm:$0xff]
    %v133 = vld [vmem:[#allocation2 + $0x78] sm:$0xff]
    %v134 = vld [vmem:[#allocation2 + $0x80] sm:$0xff]
    %v135 = vld [vmem:[#allocation2 + $0x88] sm:$0xff]
    %v136 = vld [vmem:[#allocation2 + $0x90] sm:$0xff]
    %v137 = vld [vmem:[#allocation2 + $0x98] sm:$0xff]
    %v138 = vld [vmem:[#allocation2 + $0xa0] sm:$0xff]
    %v139 = vld [vmem:[#allocation2 + $0xa8] sm:$0xff]
    %v140 = vld [vmem:[#allocation2 + $0xb0] sm:$0xff]
    %v141 = vld [vmem:[#allocation2 + $0xb8] sm:$0xff]
    %v142 = vld [vmem:[#allocation2 + $0xc0] sm:$0xff]
    %v143 = vld [vmem:[#allocation2 + $0xc8] sm:$0xff]
    %v144 = vld [vmem:[#allocation2 + $0xd0] sm:$0xff]
    %v145 = vld [vmem:[#allocation2 + $0xd8] sm:$0xff]
    %v146 = vpack.c.bf16 %v125, %v118
    %v147 = vpack.c.bf16 %v126, %v119
    %v148 = vpack.c.bf16 %v127, %v120
    %v149 = vpack.c.bf16 %v128, %v121
    %v150 = vpack.c.bf16 %v129, %v122
    %v151 = vpack.c.bf16 %v130, %v123
    %v152 = vpack.c.bf16 %v131, %v124
    %v153 = vpack.c.bf16 %v139, %v132
    %v154 = vpack.c.bf16 %v140, %v133
    %v155 = vpack.c.bf16 %v141, %v134
    %v156 = vpack.c.bf16 %v142, %v135
    %v157 = vpack.c.bf16 %v143, %v136
    %v158 = vpack.c.bf16 %v144, %v137
    %v159 = vpack.c.bf16 %v145, %v138
    %v160 = vld [vmem:[#allocation5] sm:$0xff]
    %v161 = vld [vmem:[#allocation5 + $0x8] sm:$0xff]
    %v162 = vld [vmem:[#allocation5 + $0x10] sm:$0xff]
    %v163 = vld [vmem:[#allocation5 + $0x18] sm:$0xff]
    %v164 = vld [vmem:[#allocation5 + $0x20] sm:$0xff]
    %v165 = vld [vmem:[#allocation5 + $0x28] sm:$0xff]
    %v166 = vld [vmem:[#allocation5 + $0x30] sm:$0xff]
    %v167 = vld [vmem:[#allocation5 + $0x38] sm:$0xff]
    %v168 = vld [vmem:[#allocation5 + $0x40] sm:$0xff]
    %v169 = vld [vmem:[#allocation5 + $0x48] sm:$0xff]
    %v170 = vld [vmem:[#allocation5 + $0x50] sm:$0xff]
    %v171 = vld [vmem:[#allocation5 + $0x58] sm:$0xff]
    %v172 = vld [vmem:[#allocation5 + $0x60] sm:$0xff]
    %v173 = vld [vmem:[#allocation5 + $0x68] sm:$0xff]
    %v174 = vld [vmem:[#allocation5 + $0x70] sm:$0xff]
    %v175 = vld [vmem:[#allocation5 + $0x78] sm:$0xff]
    %v176 = vld [vmem:[#allocation5 + $0x80] sm:$0xff]
    %v177 = vld [vmem:[#allocation5 + $0x88] sm:$0xff]
    %v178 = vld [vmem:[#allocation5 + $0x90] sm:$0xff]
    %v179 = vld [vmem:[#allocation5 + $0x98] sm:$0xff]
    %v180 = vld [vmem:[#allocation5 + $0xa0] sm:$0xff]
    %v181 = vld [vmem:[#allocation5 + $0xa8] sm:$0xff]
    %v182 = vld [vmem:[#allocation5 + $0xb0] sm:$0xff]
    %v183 = vld [vmem:[#allocation5 + $0xb8] sm:$0xff]
    %v184 = vld [vmem:[#allocation5 + $0xc0] sm:$0xff]
    %v185 = vld [vmem:[#allocation5 + $0xc8] sm:$0xff]
    %v186 = vld [vmem:[#allocation5 + $0xd0] sm:$0xff]
    %v187 = vld [vmem:[#allocation5 + $0xd8] sm:$0xff]
    %v188 = vld [vmem:[#allocation5 + $0xe0] sm:$0xff]
    %v189 = vld [vmem:[#allocation5 + $0xe8] sm:$0xff]
    %v190 = vld [vmem:[#allocation5 + $0xf0] sm:$0xff]
    %v191 = vld [vmem:[#allocation5 + $0xf8] sm:$0xff]
    %v192 = vld [vmem:[#allocation5 + $0x100] sm:$0xff]
    %v193 = vld [vmem:[#allocation5 + $0x108] sm:$0xff]
    %v194 = vld [vmem:[#allocation5 + $0x110] sm:$0xff]
    %v195 = vld [vmem:[#allocation5 + $0x118] sm:$0xff]
    %v196 = vld [vmem:[#allocation5 + $0x120] sm:$0xff]
    %v197 = vld [vmem:[#allocation5 + $0x128] sm:$0xff]
    %v198 = vld [vmem:[#allocation5 + $0x130] sm:$0xff]
    %v199 = vld [vmem:[#allocation5 + $0x138] sm:$0xff]
    %v200 = vld [vmem:[#allocation5 + $0x140] sm:$0xff]
    %v201 = vld [vmem:[#allocation5 + $0x148] sm:$0xff]
    %v202 = vld [vmem:[#allocation5 + $0x150] sm:$0xff]
    %v203 = vld [vmem:[#allocation5 + $0x158] sm:$0xff]
    %v204 = vld [vmem:[#allocation5 + $0x160] sm:$0xff]
    %v205 = vld [vmem:[#allocation5 + $0x168] sm:$0xff]
    %v206 = vld [vmem:[#allocation5 + $0x170] sm:$0xff]
    %v207 = vld [vmem:[#allocation5 + $0x178] sm:$0xff]
    %v208 = vld [vmem:[#allocation5 + $0x180] sm:$0xff]
    %v209 = vld [vmem:[#allocation5 + $0x188] sm:$0xff]
    %v210 = vld [vmem:[#allocation5 + $0x190] sm:$0xff]
    %v211 = vld [vmem:[#allocation5 + $0x198] sm:$0xff]
    %v212 = vld [vmem:[#allocation5 + $0x1a0] sm:$0xff]
    %v213 = vld [vmem:[#allocation5 + $0x1a8] sm:$0xff]
    %v214 = vld [vmem:[#allocation5 + $0x1b0] sm:$0xff]
    %v215 = vld [vmem:[#allocation5 + $0x1b8] sm:$0xff]
    %v216 = vld [vmem:[#allocation5 + $0x1c0] sm:$0xff]
    %v217 = vld [vmem:[#allocation5 + $0x1c8] sm:$0xff]
    %v218 = vld [vmem:[#allocation5 + $0x1d0] sm:$0xff]
    %v219 = vld [vmem:[#allocation5 + $0x1d8] sm:$0xff]
    %v220 = vld [vmem:[#allocation5 + $0x1e0] sm:$0xff]
    %v221 = vld [vmem:[#allocation5 + $0x1e8] sm:$0xff]
    %v222 = vld [vmem:[#allocation5 + $0x1f0] sm:$0xff]
    %v223 = vld [vmem:[#allocation5 + $0x1f8] sm:$0xff]
    %v224 = vld [vmem:[#allocation5 + $0x200] sm:$0xff]
    %v225 = vld [vmem:[#allocation5 + $0x208] sm:$0xff]
    %v226 = vld [vmem:[#allocation5 + $0x210] sm:$0xff]
    %v227 = vld [vmem:[#allocation5 + $0x218] sm:$0xff]
    %v228 = vld [vmem:[#allocation5 + $0x220] sm:$0xff]
    %v229 = vld [vmem:[#allocation5 + $0x228] sm:$0xff]
    %v230 = vld [vmem:[#allocation5 + $0x230] sm:$0xff]
    %v231 = vld [vmem:[#allocation5 + $0x238] sm:$0xff]
    %v232 = vld [vmem:[#allocation5 + $0x240] sm:$0xff]
    %v233 = vld [vmem:[#allocation5 + $0x248] sm:$0xff]
    %v234 = vld [vmem:[#allocation5 + $0x250] sm:$0xff]
    %v235 = vld [vmem:[#allocation5 + $0x258] sm:$0xff]
    %v236 = vld [vmem:[#allocation5 + $0x260] sm:$0xff]
    %v237 = vld [vmem:[#allocation5 + $0x268] sm:$0xff]
    %v238 = vld [vmem:[#allocation5 + $0x270] sm:$0xff]
    %v239 = vld [vmem:[#allocation5 + $0x278] sm:$0xff]
    %v240 = vld [vmem:[#allocation5 + $0x280] sm:$0xff]
    %v241 = vld [vmem:[#allocation5 + $0x288] sm:$0xff]
    %v242 = vld [vmem:[#allocation5 + $0x290] sm:$0xff]
    %v243 = vld [vmem:[#allocation5 + $0x298] sm:$0xff]
    %v244 = vld [vmem:[#allocation5 + $0x2a0] sm:$0xff]
    %v245 = vld [vmem:[#allocation5 + $0x2a8] sm:$0xff]
    %v246 = vld [vmem:[#allocation5 + $0x2b0] sm:$0xff]
    %v247 = vld [vmem:[#allocation5 + $0x2b8] sm:$0xff]
    %v248 = vld [vmem:[#allocation5 + $0x2c0] sm:$0xff]
    %v249 = vld [vmem:[#allocation5 + $0x2c8] sm:$0xff]
    %v250 = vld [vmem:[#allocation5 + $0x2d0] sm:$0xff]
    %v251 = vld [vmem:[#allocation5 + $0x2d8] sm:$0xff]
    %v252 = vld [vmem:[#allocation5 + $0x2e0] sm:$0xff]
    %v253 = vld [vmem:[#allocation5 + $0x2e8] sm:$0xff]
    %v254 = vld [vmem:[#allocation5 + $0x2f0] sm:$0xff]
    %v255 = vld [vmem:[#allocation5 + $0x2f8] sm:$0xff]
    %v256 = vld [vmem:[#allocation5 + $0x300] sm:$0xff]
    %v257 = vld [vmem:[#allocation5 + $0x308] sm:$0xff]
    %v258 = vld [vmem:[#allocation5 + $0x310] sm:$0xff]
    %v259 = vld [vmem:[#allocation5 + $0x318] sm:$0xff]
    %v260 = vld [vmem:[#allocation5 + $0x320] sm:$0xff]
    %v261 = vld [vmem:[#allocation5 + $0x328] sm:$0xff]
    %v262 = vld [vmem:[#allocation5 + $0x330] sm:$0xff]
    %v263 = vld [vmem:[#allocation5 + $0x338] sm:$0xff]
    %v264 = vld [vmem:[#allocation5 + $0x340] sm:$0xff]
    %v265 = vld [vmem:[#allocation5 + $0x348] sm:$0xff]
    %v266 = vld [vmem:[#allocation5 + $0x350] sm:$0xff]
    %v267 = vld [vmem:[#allocation5 + $0x358] sm:$0xff]
    %v268 = vld [vmem:[#allocation5 + $0x360] sm:$0xff]
    %v269 = vld [vmem:[#allocation5 + $0x368] sm:$0xff]
    %v270 = vld [vmem:[#allocation5 + $0x370] sm:$0xff]
    %v271 = vld [vmem:[#allocation5 + $0x378] sm:$0xff]
    %v272 = vld [vmem:[#allocation5 + $0x380] sm:$0xff]
    %v273 = vld [vmem:[#allocation5 + $0x388] sm:$0xff]
    %v274 = vld [vmem:[#allocation5 + $0x390] sm:$0xff]
    %v275 = vld [vmem:[#allocation5 + $0x398] sm:$0xff]
    %v276 = vld [vmem:[#allocation5 + $0x3a0] sm:$0xff]
    %v277 = vld [vmem:[#allocation5 + $0x3a8] sm:$0xff]
    %v278 = vld [vmem:[#allocation5 + $0x3b0] sm:$0xff]
    %v279 = vld [vmem:[#allocation5 + $0x3b8] sm:$0xff]
    %v280 = vld [vmem:[#allocation5 + $0x3c0] sm:$0xff]
    %v281 = vld [vmem:[#allocation5 + $0x3c8] sm:$0xff]
    %v282 = vld [vmem:[#allocation5 + $0x3d0] sm:$0xff]
    %v283 = vld [vmem:[#allocation5 + $0x3d8] sm:$0xff]
    %v284 = vld [vmem:[#allocation5 + $0x3e0] sm:$0xff]
    %v285 = vld [vmem:[#allocation5 + $0x3e8] sm:$0xff]
    %v286 = vld [vmem:[#allocation5 + $0x3f0] sm:$0xff]
    %v287 = vld [vmem:[#allocation5 + $0x3f8] sm:$0xff]
    %v288 = vld [vmem:[#allocation5 + $0x400] sm:$0xff]
    %v289 = vld [vmem:[#allocation5 + $0x408] sm:$0xff]
    %v290 = vld [vmem:[#allocation5 + $0x410] sm:$0xff]
    %v291 = vld [vmem:[#allocation5 + $0x418] sm:$0xff]
    %v292 = vld [vmem:[#allocation5 + $0x420] sm:$0xff]
    %v293 = vld [vmem:[#allocation5 + $0x428] sm:$0xff]
    %v294 = vld [vmem:[#allocation5 + $0x430] sm:$0xff]
    %v295 = vld [vmem:[#allocation5 + $0x438] sm:$0xff]
    %v296 = vld [vmem:[#allocation5 + $0x440] sm:$0xff]
    %v297 = vld [vmem:[#allocation5 + $0x448] sm:$0xff]
    %v298 = vld [vmem:[#allocation5 + $0x450] sm:$0xff]
    %v299 = vld [vmem:[#allocation5 + $0x458] sm:$0xff]
    %v300 = vld [vmem:[#allocation5 + $0x460] sm:$0xff]
    %v301 = vld [vmem:[#allocation5 + $0x468] sm:$0xff]
    %v302 = vld [vmem:[#allocation5 + $0x470] sm:$0xff]
    %v303 = vld [vmem:[#allocation5 + $0x478] sm:$0xff]
    %v304 = vld [vmem:[#allocation5 + $0x480] sm:$0xff]
    %v305 = vld [vmem:[#allocation5 + $0x488] sm:$0xff]
    %v306 = vld [vmem:[#allocation5 + $0x490] sm:$0xff]
    %v307 = vld [vmem:[#allocation5 + $0x498] sm:$0xff]
    %v308 = vld [vmem:[#allocation5 + $0x4a0] sm:$0xff]
    %v309 = vld [vmem:[#allocation5 + $0x4a8] sm:$0xff]
    %v310 = vld [vmem:[#allocation5 + $0x4b0] sm:$0xff]
    %v311 = vld [vmem:[#allocation5 + $0x4b8] sm:$0xff]
    %v312 = vld [vmem:[#allocation5 + $0x4c0] sm:$0xff]
    %v313 = vld [vmem:[#allocation5 + $0x4c8] sm:$0xff]
    %v314 = vld [vmem:[#allocation5 + $0x4d0] sm:$0xff]
    %v315 = vld [vmem:[#allocation5 + $0x4d8] sm:$0xff]
    %v316 = vld [vmem:[#allocation5 + $0x4e0] sm:$0xff]
    %v317 = vld [vmem:[#allocation5 + $0x4e8] sm:$0xff]
    %v318 = vld [vmem:[#allocation5 + $0x4f0] sm:$0xff]
    %v319 = vld [vmem:[#allocation5 + $0x4f8] sm:$0xff]
    %v320 = vld [vmem:[#allocation5 + $0x500] sm:$0xff]
    %v321 = vld [vmem:[#allocation5 + $0x508] sm:$0xff]
    %v322 = vld [vmem:[#allocation5 + $0x510] sm:$0xff]
    %v323 = vld [vmem:[#allocation5 + $0x518] sm:$0xff]
    %v324 = vld [vmem:[#allocation5 + $0x520] sm:$0xff]
    %v325 = vld [vmem:[#allocation5 + $0x528] sm:$0xff]
    %v326 = vld [vmem:[#allocation5 + $0x530] sm:$0xff]
    %v327 = vld [vmem:[#allocation5 + $0x538] sm:$0xff]
    %v328 = vld [vmem:[#allocation5 + $0x540] sm:$0xff]
    %v329 = vld [vmem:[#allocation5 + $0x548] sm:$0xff]
    %v330 = vld [vmem:[#allocation5 + $0x550] sm:$0xff]
    %v331 = vld [vmem:[#allocation5 + $0x558] sm:$0xff]
    %v332 = vld [vmem:[#allocation5 + $0x560] sm:$0xff]
    %v333 = vld [vmem:[#allocation5 + $0x568] sm:$0xff]
    %v334 = vld [vmem:[#allocation5 + $0x570] sm:$0xff]
    %v335 = vld [vmem:[#allocation5 + $0x578] sm:$0xff]
    %v336 = vld [vmem:[#allocation5 + $0x580] sm:$0xff]
    %v337 = vld [vmem:[#allocation5 + $0x588] sm:$0xff]
    %v338 = vld [vmem:[#allocation5 + $0x590] sm:$0xff]
    %v339 = vld [vmem:[#allocation5 + $0x598] sm:$0xff]
    %v340 = vld [vmem:[#allocation5 + $0x5a0] sm:$0xff]
    %v341 = vld [vmem:[#allocation5 + $0x5a8] sm:$0xff]
    %v342 = vld [vmem:[#allocation5 + $0x5b0] sm:$0xff]
    %v343 = vld [vmem:[#allocation5 + $0x5b8] sm:$0xff]
    %v344 = vld [vmem:[#allocation5 + $0x5c0] sm:$0xff]
    %v345 = vld [vmem:[#allocation5 + $0x5c8] sm:$0xff]
    %v346 = vld [vmem:[#allocation5 + $0x5d0] sm:$0xff]
    %v347 = vld [vmem:[#allocation5 + $0x5d8] sm:$0xff]
    %v348 = vld [vmem:[#allocation5 + $0x5e0] sm:$0xff]
    %v349 = vld [vmem:[#allocation5 + $0x5e8] sm:$0xff]
    %v350 = vld [vmem:[#allocation5 + $0x5f0] sm:$0xff]
    %v351 = vld [vmem:[#allocation5 + $0x5f8] sm:$0xff]
    %v352 = vld [vmem:[#allocation5 + $0x600] sm:$0xff]
    %v353 = vld [vmem:[#allocation5 + $0x608] sm:$0xff]
    %v354 = vld [vmem:[#allocation5 + $0x610] sm:$0xff]
    %v355 = vld [vmem:[#allocation5 + $0x618] sm:$0xff]
    %v356 = vld [vmem:[#allocation7] sm:$0xf]
    %v358 = vperm.slane %v356, 0
    %v359 = vperm.slane %v356, 1
    %v360 = vperm.slane %v356, 2
    %v361 = vperm.slane %v356, 3
    %v562 = vunpack.c.l.b16 %v160
    %v563 = vunpack.c.h.b16 %v160
    %v564 = vunpack.c.l.b16 %v161
    %v565 = vunpack.c.h.b16 %v161
    %v566 = vunpack.c.l.b16 %v162
    %v567 = vunpack.c.h.b16 %v162
    %v568 = vunpack.c.l.b16 %v163
    %v569 = vunpack.c.h.b16 %v163
    %v570 = vunpack.c.l.b16 %v164
    %v571 = vunpack.c.h.b16 %v164
    %v572 = vunpack.c.l.b16 %v165
    %v573 = vunpack.c.h.b16 %v165
    %v574 = vunpack.c.l.b16 %v166
    %v575 = vunpack.c.h.b16 %v166
    %v576 = vunpack.c.l.b16 %v167
    %v577 = vunpack.c.h.b16 %v167
    %v578 = vunpack.c.l.b16 %v168
    %v579 = vunpack.c.h.b16 %v168
    %v580 = vunpack.c.l.b16 %v169
    %v581 = vunpack.c.h.b16 %v169
    %v582 = vunpack.c.l.b16 %v170
    %v583 = vunpack.c.h.b16 %v170
    %v584 = vunpack.c.l.b16 %v171
    %v585 = vunpack.c.h.b16 %v171
    %v586 = vunpack.c.l.b16 %v172
    %v587 = vunpack.c.h.b16 %v172
    %v588 = vunpack.c.l.b16 %v173
    %v589 = vunpack.c.h.b16 %v173
    %v590 = vunpack.c.l.b16 %v174
    %v591 = vunpack.c.h.b16 %v174
    %v592 = vunpack.c.l.b16 %v175
    %v593 = vunpack.c.h.b16 %v175
    %v594 = vunpack.c.l.b16 %v176
    %v595 = vunpack.c.h.b16 %v176
    %v596 = vunpack.c.l.b16 %v177
    %v597 = vunpack.c.h.b16 %v177
    %v598 = vunpack.c.l.b16 %v178
    %v599 = vunpack.c.h.b16 %v178
    %v600 = vunpack.c.l.b16 %v179
    %v601 = vunpack.c.h.b16 %v179
    %v602 = vunpack.c.l.b16 %v180
    %v603 = vunpack.c.h.b16 %v180
    %v604 = vunpack.c.l.b16 %v181
    %v605 = vunpack.c.h.b16 %v181
    %v606 = vunpack.c.l.b16 %v182
    %v607 = vunpack.c.h.b16 %v182
    %v608 = vunpack.c.l.b16 %v183
    %v609 = vunpack.c.h.b16 %v183
    %v610 = vunpack.c.l.b16 %v184
    %v611 = vunpack.c.h.b16 %v184
    %v612 = vunpack.c.l.b16 %v185
    %v613 = vunpack.c.h.b16 %v185
    %v614 = vunpack.c.l.b16 %v186
    %v615 = vunpack.c.h.b16 %v186
    %v616 = vunpack.c.l.b16 %v187
    %v617 = vunpack.c.h.b16 %v187
    %v618 = vunpack.c.l.b16 %v188
    %v619 = vunpack.c.h.b16 %v188
    %v620 = vunpack.c.l.b16 %v189
    %v621 = vunpack.c.h.b16 %v189
    %v622 = vunpack.c.l.b16 %v190
    %v623 = vunpack.c.h.b16 %v190
    %v624 = vunpack.c.l.b16 %v191
    %v625 = vunpack.c.h.b16 %v191
    %v626 = vunpack.c.l.b16 %v192
    %v627 = vunpack.c.h.b16 %v192
    %v628 = vunpack.c.l.b16 %v193
    %v629 = vunpack.c.h.b16 %v193
    %v630 = vunpack.c.l.b16 %v194
    %v631 = vunpack.c.h.b16 %v194
    %v632 = vunpack.c.l.b16 %v195
    %v633 = vunpack.c.h.b16 %v195
    %v634 = vunpack.c.l.b16 %v196
    %v635 = vunpack.c.h.b16 %v196
    %v636 = vunpack.c.l.b16 %v197
    %v637 = vunpack.c.h.b16 %v197
    %v638 = vunpack.c.l.b16 %v198
    %v639 = vunpack.c.h.b16 %v198
    %v640 = vunpack.c.l.b16 %v199
    %v641 = vunpack.c.h.b16 %v199
    %v642 = vunpack.c.l.b16 %v200
    %v643 = vunpack.c.h.b16 %v200
    %v644 = vunpack.c.l.b16 %v201
    %v645 = vunpack.c.h.b16 %v201
    %v646 = vunpack.c.l.b16 %v202
    %v647 = vunpack.c.h.b16 %v202
    %v648 = vunpack.c.l.b16 %v203
    %v649 = vunpack.c.h.b16 %v203
    %v650 = vunpack.c.l.b16 %v204
    %v651 = vunpack.c.h.b16 %v204
    %v652 = vunpack.c.l.b16 %v205
    %v653 = vunpack.c.h.b16 %v205
    %v654 = vunpack.c.l.b16 %v206
    %v655 = vunpack.c.h.b16 %v206
    %v656 = vunpack.c.l.b16 %v207
    %v657 = vunpack.c.h.b16 %v207
    %v658 = vunpack.c.l.b16 %v208
    %v659 = vunpack.c.h.b16 %v208
    %v660 = vunpack.c.l.b16 %v209
    %v661 = vunpack.c.h.b16 %v209
    %v662 = vunpack.c.l.b16 %v210
    %v663 = vunpack.c.h.b16 %v210
    %v664 = vunpack.c.l.b16 %v211
    %v665 = vunpack.c.h.b16 %v211
    %v666 = vunpack.c.l.b16 %v212
    %v667 = vunpack.c.h.b16 %v212
    %v668 = vunpack.c.l.b16 %v213
    %v669 = vunpack.c.h.b16 %v213
    %v670 = vunpack.c.l.b16 %v214
    %v671 = vunpack.c.h.b16 %v214
    %v672 = vunpack.c.l.b16 %v215
    %v673 = vunpack.c.h.b16 %v215
    %v674 = vunpack.c.l.b16 %v216
    %v675 = vunpack.c.h.b16 %v216
    %v676 = vunpack.c.l.b16 %v217
    %v677 = vunpack.c.h.b16 %v217
    %v678 = vunpack.c.l.b16 %v218
    %v679 = vunpack.c.h.b16 %v218
    %v680 = vunpack.c.l.b16 %v219
    %v681 = vunpack.c.h.b16 %v219
    %v682 = vunpack.c.l.b16 %v220
    %v683 = vunpack.c.h.b16 %v220
    %v684 = vunpack.c.l.b16 %v221
    %v685 = vunpack.c.h.b16 %v221
    %v686 = vunpack.c.l.b16 %v222
    %v687 = vunpack.c.h.b16 %v222
    %v688 = vunpack.c.l.b16 %v223
    %v689 = vunpack.c.h.b16 %v223
    %v690 = vunpack.c.l.b16 %v224
    %v691 = vunpack.c.h.b16 %v224
    %v692 = vunpack.c.l.b16 %v225
    %v693 = vunpack.c.h.b16 %v225
    %v694 = vunpack.c.l.b16 %v226
    %v695 = vunpack.c.h.b16 %v226
    %v696 = vunpack.c.l.b16 %v227
    %v697 = vunpack.c.h.b16 %v227
    %v698 = vunpack.c.l.b16 %v228
    %v699 = vunpack.c.h.b16 %v228
    %v700 = vunpack.c.l.b16 %v229
    %v701 = vunpack.c.h.b16 %v229
    %v702 = vunpack.c.l.b16 %v230
    %v703 = vunpack.c.h.b16 %v230
    %v704 = vunpack.c.l.b16 %v231
    %v705 = vunpack.c.h.b16 %v231
    %v706 = vunpack.c.l.b16 %v232
    %v707 = vunpack.c.h.b16 %v232
    %v708 = vunpack.c.l.b16 %v233
    %v709 = vunpack.c.h.b16 %v233
    %v710 = vunpack.c.l.b16 %v234
    %v711 = vunpack.c.h.b16 %v234
    %v712 = vunpack.c.l.b16 %v235
    %v713 = vunpack.c.h.b16 %v235
    %v714 = vunpack.c.l.b16 %v236
    %v715 = vunpack.c.h.b16 %v236
    %v716 = vunpack.c.l.b16 %v237
    %v717 = vunpack.c.h.b16 %v237
    %v718 = vunpack.c.l.b16 %v238
    %v719 = vunpack.c.h.b16 %v238
    %v720 = vunpack.c.l.b16 %v239
    %v721 = vunpack.c.h.b16 %v239
    %v722 = vunpack.c.l.b16 %v240
    %v723 = vunpack.c.h.b16 %v240
    %v724 = vunpack.c.l.b16 %v241
    %v725 = vunpack.c.h.b16 %v241
    %v726 = vunpack.c.l.b16 %v242
    %v727 = vunpack.c.h.b16 %v242
    %v728 = vunpack.c.l.b16 %v243
    %v729 = vunpack.c.h.b16 %v243
    %v730 = vunpack.c.l.b16 %v244
    %v731 = vunpack.c.h.b16 %v244
    %v732 = vunpack.c.l.b16 %v245
    %v733 = vunpack.c.h.b16 %v245
    %v734 = vunpack.c.l.b16 %v246
    %v735 = vunpack.c.h.b16 %v246
    %v736 = vunpack.c.l.b16 %v247
    %v737 = vunpack.c.h.b16 %v247
    %v738 = vunpack.c.l.b16 %v248
    %v739 = vunpack.c.h.b16 %v248
    %v740 = vunpack.c.l.b16 %v249
    %v741 = vunpack.c.h.b16 %v249
    %v742 = vunpack.c.l.b16 %v250
    %v743 = vunpack.c.h.b16 %v250
    %v744 = vunpack.c.l.b16 %v251
    %v745 = vunpack.c.h.b16 %v251
    %v746 = vunpack.c.l.b16 %v252
    %v747 = vunpack.c.h.b16 %v252
    %v748 = vunpack.c.l.b16 %v253
    %v749 = vunpack.c.h.b16 %v253
    %v750 = vunpack.c.l.b16 %v254
    %v751 = vunpack.c.h.b16 %v254
    %v752 = vunpack.c.l.b16 %v255
    %v753 = vunpack.c.h.b16 %v255
    %v754 = vunpack.c.l.b16 %v256
    %v755 = vunpack.c.h.b16 %v256
    %v756 = vunpack.c.l.b16 %v257
    %v757 = vunpack.c.h.b16 %v257
    %v758 = vunpack.c.l.b16 %v258
    %v759 = vunpack.c.h.b16 %v258
    %v760 = vunpack.c.l.b16 %v259
    %v761 = vunpack.c.h.b16 %v259
    %v762 = vunpack.c.l.b16 %v260
    %v763 = vunpack.c.h.b16 %v260
    %v764 = vunpack.c.l.b16 %v261
    %v765 = vunpack.c.h.b16 %v261
    %v766 = vunpack.c.l.b16 %v262
    %v767 = vunpack.c.h.b16 %v262
    %v768 = vunpack.c.l.b16 %v263
    %v769 = vunpack.c.h.b16 %v263
    %v770 = vunpack.c.l.b16 %v264
    %v771 = vunpack.c.h.b16 %v264
    %v772 = vunpack.c.l.b16 %v265
    %v773 = vunpack.c.h.b16 %v265
    %v774 = vunpack.c.l.b16 %v266
    %v775 = vunpack.c.h.b16 %v266
    %v776 = vunpack.c.l.b16 %v267
    %v777 = vunpack.c.h.b16 %v267
    %v778 = vunpack.c.l.b16 %v268
    %v779 = vunpack.c.h.b16 %v268
    %v780 = vunpack.c.l.b16 %v269
    %v781 = vunpack.c.h.b16 %v269
    %v782 = vunpack.c.l.b16 %v270
    %v783 = vunpack.c.h.b16 %v270
    %v784 = vunpack.c.l.b16 %v271
    %v785 = vunpack.c.h.b16 %v271
    %v786 = vunpack.c.l.b16 %v272
    %v787 = vunpack.c.h.b16 %v272
    %v788 = vunpack.c.l.b16 %v273
    %v789 = vunpack.c.h.b16 %v273
    %v790 = vunpack.c.l.b16 %v274
    %v791 = vunpack.c.h.b16 %v274
    %v792 = vunpack.c.l.b16 %v275
    %v793 = vunpack.c.h.b16 %v275
    %v794 = vunpack.c.l.b16 %v276
    %v795 = vunpack.c.h.b16 %v276
    %v796 = vunpack.c.l.b16 %v277
    %v797 = vunpack.c.h.b16 %v277
    %v798 = vunpack.c.l.b16 %v278
    %v799 = vunpack.c.h.b16 %v278
    %v800 = vunpack.c.l.b16 %v279
    %v801 = vunpack.c.h.b16 %v279
    %v802 = vunpack.c.l.b16 %v280
    %v803 = vunpack.c.h.b16 %v280
    %v804 = vunpack.c.l.b16 %v281
    %v805 = vunpack.c.h.b16 %v281
    %v806 = vunpack.c.l.b16 %v282
    %v807 = vunpack.c.h.b16 %v282
    %v808 = vunpack.c.l.b16 %v283
    %v809 = vunpack.c.h.b16 %v283
    %v810 = vunpack.c.l.b16 %v284
    %v811 = vunpack.c.h.b16 %v284
    %v812 = vunpack.c.l.b16 %v285
    %v813 = vunpack.c.h.b16 %v285
    %v814 = vunpack.c.l.b16 %v286
    %v815 = vunpack.c.h.b16 %v286
    %v816 = vunpack.c.l.b16 %v287
    %v817 = vunpack.c.h.b16 %v287
    %v818 = vunpack.c.l.b16 %v288
    %v819 = vunpack.c.h.b16 %v288
    %v820 = vunpack.c.l.b16 %v289
    %v821 = vunpack.c.h.b16 %v289
    %v822 = vunpack.c.l.b16 %v290
    %v823 = vunpack.c.h.b16 %v290
    %v824 = vunpack.c.l.b16 %v291
    %v825 = vunpack.c.h.b16 %v291
    %v826 = vunpack.c.l.b16 %v292
    %v827 = vunpack.c.h.b16 %v292
    %v828 = vunpack.c.l.b16 %v293
    %v829 = vunpack.c.h.b16 %v293
    %v830 = vunpack.c.l.b16 %v294
    %v831 = vunpack.c.h.b16 %v294
    %v832 = vunpack.c.l.b16 %v295
    %v833 = vunpack.c.h.b16 %v295
    %v834 = vunpack.c.l.b16 %v296
    %v835 = vunpack.c.h.b16 %v296
    %v836 = vunpack.c.l.b16 %v297
    %v837 = vunpack.c.h.b16 %v297
    %v838 = vunpack.c.l.b16 %v298
    %v839 = vunpack.c.h.b16 %v298
    %v840 = vunpack.c.l.b16 %v299
    %v841 = vunpack.c.h.b16 %v299
    %v842 = vunpack.c.l.b16 %v300
    %v843 = vunpack.c.h.b16 %v300
    %v844 = vunpack.c.l.b16 %v301
    %v845 = vunpack.c.h.b16 %v301
    %v846 = vunpack.c.l.b16 %v302
    %v847 = vunpack.c.h.b16 %v302
    %v848 = vunpack.c.l.b16 %v303
    %v849 = vunpack.c.h.b16 %v303
    %v850 = vunpack.c.l.b16 %v304
    %v851 = vunpack.c.h.b16 %v304
    %v852 = vunpack.c.l.b16 %v305
    %v853 = vunpack.c.h.b16 %v305
    %v854 = vunpack.c.l.b16 %v306
    %v855 = vunpack.c.h.b16 %v306
    %v856 = vunpack.c.l.b16 %v307
    %v857 = vunpack.c.h.b16 %v307
    %v858 = vunpack.c.l.b16 %v308
    %v859 = vunpack.c.h.b16 %v308
    %v860 = vunpack.c.l.b16 %v309
    %v861 = vunpack.c.h.b16 %v309
    %v862 = vunpack.c.l.b16 %v310
    %v863 = vunpack.c.h.b16 %v310
    %v864 = vunpack.c.l.b16 %v311
    %v865 = vunpack.c.h.b16 %v311
    %v866 = vunpack.c.l.b16 %v312
    %v867 = vunpack.c.h.b16 %v312
    %v868 = vunpack.c.l.b16 %v313
    %v869 = vunpack.c.h.b16 %v313
    %v870 = vunpack.c.l.b16 %v314
    %v871 = vunpack.c.h.b16 %v314
    %v872 = vunpack.c.l.b16 %v315
    %v873 = vunpack.c.h.b16 %v315
    %v874 = vunpack.c.l.b16 %v316
    %v875 = vunpack.c.h.b16 %v316
    %v876 = vunpack.c.l.b16 %v317
    %v877 = vunpack.c.h.b16 %v317
    %v878 = vunpack.c.l.b16 %v318
    %v879 = vunpack.c.h.b16 %v318
    %v880 = vunpack.c.l.b16 %v319
    %v881 = vunpack.c.h.b16 %v319
    %v882 = vunpack.c.l.b16 %v320
    %v883 = vunpack.c.h.b16 %v320
    %v884 = vunpack.c.l.b16 %v321
    %v885 = vunpack.c.h.b16 %v321
    %v886 = vunpack.c.l.b16 %v322
    %v887 = vunpack.c.h.b16 %v322
    %v888 = vunpack.c.l.b16 %v323
    %v889 = vunpack.c.h.b16 %v323
    %v890 = vunpack.c.l.b16 %v324
    %v891 = vunpack.c.h.b16 %v324
    %v892 = vunpack.c.l.b16 %v325
    %v893 = vunpack.c.h.b16 %v325
    %v894 = vunpack.c.l.b16 %v326
    %v895 = vunpack.c.h.b16 %v326
    %v896 = vunpack.c.l.b16 %v327
    %v897 = vunpack.c.h.b16 %v327
    %v898 = vunpack.c.l.b16 %v328
    %v899 = vunpack.c.h.b16 %v328
    %v900 = vunpack.c.l.b16 %v329
    %v901 = vunpack.c.h.b16 %v329
    %v902 = vunpack.c.l.b16 %v330
    %v903 = vunpack.c.h.b16 %v330
    %v904 = vunpack.c.l.b16 %v331
    %v905 = vunpack.c.h.b16 %v331
    %v906 = vunpack.c.l.b16 %v332
    %v907 = vunpack.c.h.b16 %v332
    %v908 = vunpack.c.l.b16 %v333
    %v909 = vunpack.c.h.b16 %v333
    %v910 = vunpack.c.l.b16 %v334
    %v911 = vunpack.c.h.b16 %v334
    %v912 = vunpack.c.l.b16 %v335
    %v913 = vunpack.c.h.b16 %v335
    %v914 = vunpack.c.l.b16 %v336
    %v915 = vunpack.c.h.b16 %v336
    %v916 = vunpack.c.l.b16 %v337
    %v917 = vunpack.c.h.b16 %v337
    %v918 = vunpack.c.l.b16 %v338
    %v919 = vunpack.c.h.b16 %v338
    %v920 = vunpack.c.l.b16 %v339
    %v921 = vunpack.c.h.b16 %v339
    %v922 = vunpack.c.l.b16 %v340
    %v923 = vunpack.c.h.b16 %v340
    %v924 = vunpack.c.l.b16 %v341
    %v925 = vunpack.c.h.b16 %v341
    %v926 = vunpack.c.l.b16 %v342
    %v927 = vunpack.c.h.b16 %v342
    %v928 = vunpack.c.l.b16 %v343
    %v929 = vunpack.c.h.b16 %v343
    %v930 = vunpack.c.l.b16 %v344
    %v931 = vunpack.c.h.b16 %v344
    %v932 = vunpack.c.l.b16 %v345
    %v933 = vunpack.c.h.b16 %v345
    %v934 = vunpack.c.l.b16 %v346
    %v935 = vunpack.c.h.b16 %v346
    %v936 = vunpack.c.l.b16 %v347
    %v937 = vunpack.c.h.b16 %v347
    %v938 = vunpack.c.l.b16 %v348
    %v939 = vunpack.c.h.b16 %v348
    %v940 = vunpack.c.l.b16 %v349
    %v941 = vunpack.c.h.b16 %v349
    %v942 = vunpack.c.l.b16 %v350
    %v943 = vunpack.c.h.b16 %v350
    %v944 = vunpack.c.l.b16 %v351
    %v945 = vunpack.c.h.b16 %v351
    %v946 = vunpack.c.l.b16 %v352
    %v947 = vunpack.c.h.b16 %v352
    %v948 = vunpack.c.l.b16 %v353
    %v949 = vunpack.c.h.b16 %v353
    %v950 = vunpack.c.l.b16 %v354
    %v951 = vunpack.c.h.b16 %v354
    %v952 = vunpack.c.l.b16 %v355
    %v953 = vunpack.c.h.b16 %v355
    %v954 = vpack.c.b16 %v566, %v562
    %v955 = vpack.c.b16 %v567, %v563
    %v956 = vpack.c.b16 %v568, %v564
    %v957 = vpack.c.b16 %v569, %v565
    %v958 = vpack.c.b16 %v574, %v570
    %v959 = vpack.c.b16 %v575, %v571
    %v960 = vpack.c.b16 %v576, %v572
    %v961 = vpack.c.b16 %v577, %v573
    %v962 = vpack.c.b16 %v582, %v578
    %v963 = vpack.c.b16 %v583, %v579
    %v964 = vpack.c.b16 %v584, %v580
    %v965 = vpack.c.b16 %v585, %v581
    %v966 = vpack.c.b16 %v590, %v586
    %v967 = vpack.c.b16 %v591, %v587
    %v968 = vpack.c.b16 %v592, %v588
    %v969 = vpack.c.b16 %v593, %v589
    %v970 = vpack.c.b16 %v598, %v594
    %v971 = vpack.c.b16 %v599, %v595
    %v972 = vpack.c.b16 %v600, %v596
    %v973 = vpack.c.b16 %v601, %v597
    %v974 = vpack.c.b16 %v606, %v602
    %v975 = vpack.c.b16 %v607, %v603
    %v976 = vpack.c.b16 %v608, %v604
    %v977 = vpack.c.b16 %v609, %v605
    %v978 = vpack.c.b16 %v614, %v610
    %v979 = vpack.c.b16 %v615, %v611
    %v980 = vpack.c.b16 %v616, %v612
    %v981 = vpack.c.b16 %v617, %v613
    %v982 = vpack.c.b16 %v622, %v618
    %v983 = vpack.c.b16 %v623, %v619
    %v984 = vpack.c.b16 %v624, %v620
    %v985 = vpack.c.b16 %v625, %v621
    %v986 = vpack.c.b16 %v630, %v626
    %v987 = vpack.c.b16 %v631, %v627
    %v988 = vpack.c.b16 %v632, %v628
    %v989 = vpack.c.b16 %v633, %v629
    %v990 = vpack.c.b16 %v638, %v634
    %v991 = vpack.c.b16 %v639, %v635
    %v992 = vpack.c.b16 %v640, %v636
    %v993 = vpack.c.b16 %v641, %v637
    %v994 = vpack.c.b16 %v646, %v642
    %v995 = vpack.c.b16 %v647, %v643
    %v996 = vpack.c.b16 %v648, %v644
    %v997 = vpack.c.b16 %v649, %v645
    %v998 = vpack.c.b16 %v654, %v650
    %v999 = vpack.c.b16 %v655, %v651
    %v1000 = vpack.c.b16 %v656, %v652
    %v1001 = vpack.c.b16 %v657, %v653
    %v1002 = vpack.c.b16 %v662, %v658
    %v1003 = vpack.c.b16 %v663, %v659
    %v1004 = vpack.c.b16 %v664, %v660
    %v1005 = vpack.c.b16 %v665, %v661
    %v1006 = vpack.c.b16 %v670, %v666
    %v1007 = vpack.c.b16 %v671, %v667
    %v1008 = vpack.c.b16 %v672, %v668
    %v1009 = vpack.c.b16 %v673, %v669
    %v1010 = vpack.c.b16 %v678, %v674
    %v1011 = vpack.c.b16 %v679, %v675
    %v1012 = vpack.c.b16 %v680, %v676
    %v1013 = vpack.c.b16 %v681, %v677
    %v1014 = vpack.c.b16 %v686, %v682
    %v1015 = vpack.c.b16 %v687, %v683
    %v1016 = vpack.c.b16 %v688, %v684
    %v1017 = vpack.c.b16 %v689, %v685
    %v1018 = vpack.c.b16 %v694, %v690
    %v1019 = vpack.c.b16 %v695, %v691
    %v1020 = vpack.c.b16 %v696, %v692
    %v1021 = vpack.c.b16 %v697, %v693
    %v1022 = vpack.c.b16 %v702, %v698
    %v1023 = vpack.c.b16 %v703, %v699
    %v1024 = vpack.c.b16 %v704, %v700
    %v1025 = vpack.c.b16 %v705, %v701
    %v1026 = vpack.c.b16 %v710, %v706
    %v1027 = vpack.c.b16 %v711, %v707
    %v1028 = vpack.c.b16 %v712, %v708
    %v1029 = vpack.c.b16 %v713, %v709
    %v1030 = vpack.c.b16 %v718, %v714
    %v1031 = vpack.c.b16 %v719, %v715
    %v1032 = vpack.c.b16 %v720, %v716
    %v1033 = vpack.c.b16 %v721, %v717
    %v1034 = vpack.c.b16 %v726, %v722
    %v1035 = vpack.c.b16 %v727, %v723
    %v1036 = vpack.c.b16 %v728, %v724
    %v1037 = vpack.c.b16 %v729, %v725
    %v1038 = vpack.c.b16 %v734, %v730
    %v1039 = vpack.c.b16 %v735, %v731
    %v1040 = vpack.c.b16 %v736, %v732
    %v1041 = vpack.c.b16 %v737, %v733
    %v1042 = vpack.c.b16 %v742, %v738
    %v1043 = vpack.c.b16 %v743, %v739
    %v1044 = vpack.c.b16 %v744, %v740
    %v1045 = vpack.c.b16 %v745, %v741
    %v1046 = vpack.c.b16 %v750, %v746
    %v1047 = vpack.c.b16 %v751, %v747
    %v1048 = vpack.c.b16 %v752, %v748
    %v1049 = vpack.c.b16 %v753, %v749
    %v1050 = vpack.c.b16 %v758, %v754
    %v1051 = vpack.c.b16 %v759, %v755
    %v1052 = vpack.c.b16 %v760, %v756
    %v1053 = vpack.c.b16 %v761, %v757
    %v1054 = vpack.c.b16 %v766, %v762
    %v1055 = vpack.c.b16 %v767, %v763
    %v1056 = vpack.c.b16 %v768, %v764
    %v1057 = vpack.c.b16 %v769, %v765
    %v1058 = vpack.c.b16 %v774, %v770
    %v1059 = vpack.c.b16 %v775, %v771
    %v1060 = vpack.c.b16 %v776, %v772
    %v1061 = vpack.c.b16 %v777, %v773
    %v1062 = vpack.c.b16 %v782, %v778
    %v1063 = vpack.c.b16 %v783, %v779
    %v1064 = vpack.c.b16 %v784, %v780
    %v1065 = vpack.c.b16 %v785, %v781
    %v1066 = vpack.c.b16 %v790, %v786
    %v1067 = vpack.c.b16 %v791, %v787
    %v1068 = vpack.c.b16 %v792, %v788
    %v1069 = vpack.c.b16 %v793, %v789
    %v1070 = vpack.c.b16 %v798, %v794
    %v1071 = vpack.c.b16 %v799, %v795
    %v1072 = vpack.c.b16 %v800, %v796
    %v1073 = vpack.c.b16 %v801, %v797
    %v1074 = vpack.c.b16 %v806, %v802
    %v1075 = vpack.c.b16 %v807, %v803
    %v1076 = vpack.c.b16 %v808, %v804
    %v1077 = vpack.c.b16 %v809, %v805
    %v1078 = vpack.c.b16 %v814, %v810
    %v1079 = vpack.c.b16 %v815, %v811
    %v1080 = vpack.c.b16 %v816, %v812
    %v1081 = vpack.c.b16 %v817, %v813
    %v1082 = vpack.c.b16 %v822, %v818
    %v1083 = vpack.c.b16 %v823, %v819
    %v1084 = vpack.c.b16 %v824, %v820
    %v1085 = vpack.c.b16 %v825, %v821
    %v1086 = vpack.c.b16 %v830, %v826
    %v1087 = vpack.c.b16 %v831, %v827
    %v1088 = vpack.c.b16 %v832, %v828
    %v1089 = vpack.c.b16 %v833, %v829
    %v1090 = vpack.c.b16 %v838, %v834
    %v1091 = vpack.c.b16 %v839, %v835
    %v1092 = vpack.c.b16 %v840, %v836
    %v1093 = vpack.c.b16 %v841, %v837
    %v1094 = vpack.c.b16 %v846, %v842
    %v1095 = vpack.c.b16 %v847, %v843
    %v1096 = vpack.c.b16 %v848, %v844
    %v1097 = vpack.c.b16 %v849, %v845
    %v1098 = vpack.c.b16 %v854, %v850
    %v1099 = vpack.c.b16 %v855, %v851
    %v1100 = vpack.c.b16 %v856, %v852
    %v1101 = vpack.c.b16 %v857, %v853
    %v1102 = vpack.c.b16 %v862, %v858
    %v1103 = vpack.c.b16 %v863, %v859
    %v1104 = vpack.c.b16 %v864, %v860
    %v1105 = vpack.c.b16 %v865, %v861
    %v1106 = vpack.c.b16 %v870, %v866
    %v1107 = vpack.c.b16 %v871, %v867
    %v1108 = vpack.c.b16 %v872, %v868
    %v1109 = vpack.c.b16 %v873, %v869
    %v1110 = vpack.c.b16 %v878, %v874
    %v1111 = vpack.c.b16 %v879, %v875
    %v1112 = vpack.c.b16 %v880, %v876
    %v1113 = vpack.c.b16 %v881, %v877
    %v1114 = vpack.c.b16 %v886, %v882
    %v1115 = vpack.c.b16 %v887, %v883
    %v1116 = vpack.c.b16 %v888, %v884
    %v1117 = vpack.c.b16 %v889, %v885
    %v1118 = vpack.c.b16 %v894, %v890
    %v1119 = vpack.c.b16 %v895, %v891
    %v1120 = vpack.c.b16 %v896, %v892
    %v1121 = vpack.c.b16 %v897, %v893
    %v1122 = vpack.c.b16 %v902, %v898
    %v1123 = vpack.c.b16 %v903, %v899
    %v1124 = vpack.c.b16 %v904, %v900
    %v1125 = vpack.c.b16 %v905, %v901
    %v1126 = vpack.c.b16 %v910, %v906
    %v1127 = vpack.c.b16 %v911, %v907
    %v1128 = vpack.c.b16 %v912, %v908
    %v1129 = vpack.c.b16 %v913, %v909
    %v1130 = vpack.c.b16 %v918, %v914
    %v1131 = vpack.c.b16 %v919, %v915
    %v1132 = vpack.c.b16 %v920, %v916
    %v1133 = vpack.c.b16 %v921, %v917
    %v1134 = vpack.c.b16 %v926, %v922
    %v1135 = vpack.c.b16 %v927, %v923
    %v1136 = vpack.c.b16 %v928, %v924
    %v1137 = vpack.c.b16 %v929, %v925
    %v1138 = vpack.c.b16 %v934, %v930
    %v1139 = vpack.c.b16 %v935, %v931
    %v1140 = vpack.c.b16 %v936, %v932
    %v1141 = vpack.c.b16 %v937, %v933
    %v1142 = vpack.c.b16 %v942, %v938
    %v1143 = vpack.c.b16 %v943, %v939
    %v1144 = vpack.c.b16 %v944, %v940
    %v1145 = vpack.c.b16 %v945, %v941
    %v1146 = vpack.c.b16 %v950, %v946
    %v1147 = vpack.c.b16 %v951, %v947
    %v1148 = vpack.c.b16 %v952, %v948
    %v1149 = vpack.c.b16 %v953, %v949
    %vm1346 = vcmask 130048
    %v1348 = vsel %vm1346, %v152, 0
    %v1351 = vsel %vm1346, %v159, 0
    %1353 = vmatpush.bf16.msra.mxu0 %v982
    %1354 = vmatpush.bf16.msra.mxu0 %v978
    %1355 = vmatpush.bf16.msra.mxu0 %v974
    %1356 = vmatpush.bf16.msra.mxu0 %v970
    %1357 = vmatpush.bf16.msra.mxu0 %v966
    %1358 = vmatpush.bf16.msra.mxu0 %v962
    %1359 = vmatpush.bf16.msra.mxu0 %v958
    %1360 = vmatpush.bf16.msra.mxu0 %v954
    %1361 = vmatmul.bf16.gmra.mxu0 %v146
    %v1362 = vpop.f32.mrf.mxu0
    %v1363 = vadd.f32 %v358, %v1362
    %v1364 = vpop.f32.mrf.mxu0
    %v1365 = vadd.f32 %v358, %v1364
    %1366 = vmatmul.bf16.gmra.mxu0 %v153
    %v1367 = vpop.f32.mrf.mxu0
    %v1368 = vadd.f32 %v358, %v1367
    %v1369 = vpop.f32.mrf.mxu0
    %v1370 = vadd.f32 %v358, %v1369
    %1371 = vdwg.mxu0
    %1372 = vmatpush.bf16.msra.mxu0 %v1014
    %1373 = vmatpush.bf16.msra.mxu0 %v1010
    %1374 = vmatpush.bf16.msra.mxu0 %v1006
    %1375 = vmatpush.bf16.msra.mxu0 %v1002
    %1376 = vmatpush.bf16.msra.mxu0 %v998
    %1377 = vmatpush.bf16.msra.mxu0 %v994
    %1378 = vmatpush.bf16.msra.mxu0 %v990
    %1379 = vmatpush.bf16.msra.mxu0 %v986
    %1380 = vmatmul.bf16.gmra.mxu0 %v147
    %v1381 = vpop.f32.mrf.mxu0
    %v1382 = vadd.f32 %v1363, %v1381
    %v1383 = vpop.f32.mrf.mxu0
    %v1384 = vadd.f32 %v1365, %v1383
    %1385 = vmatmul.bf16.gmra.mxu0 %v154
    %v1386 = vpop.f32.mrf.mxu0
    %v1387 = vadd.f32 %v1368, %v1386
    %v1388 = vpop.f32.mrf.mxu0
    %v1389 = vadd.f32 %v1370, %v1388
    %1390 = vdwg.mxu0
    %1391 = vmatpush.bf16.msra.mxu0 %v1046
    %1392 = vmatpush.bf16.msra.mxu0 %v1042
    %1393 = vmatpush.bf16.msra.mxu0 %v1038
    %1394 = vmatpush.bf16.msra.mxu0 %v1034
    %1395 = vmatpush.bf16.msra.mxu0 %v1030
    %1396 = vmatpush.bf16.msra.mxu0 %v1026
    %1397 = vmatpush.bf16.msra.mxu0 %v1022
    %1398 = vmatpush.bf16.msra.mxu0 %v1018
    %1399 = vmatmul.bf16.gmra.mxu0 %v148
    %v1400 = vpop.f32.mrf.mxu0
    %v1401 = vadd.f32 %v1382, %v1400
    %v1402 = vpop.f32.mrf.mxu0
    %v1403 = vadd.f32 %v1384, %v1402
    %1404 = vmatmul.bf16.gmra.mxu0 %v155
    %v1405 = vpop.f32.mrf.mxu0
    %v1406 = vadd.f32 %v1387, %v1405
    %v1407 = vpop.f32.mrf.mxu0
    %v1408 = vadd.f32 %v1389, %v1407
    %1409 = vdwg.mxu0
    %1410 = vmatpush.bf16.msra.mxu0 %v1078
    %1411 = vmatpush.bf16.msra.mxu0 %v1074
    %1412 = vmatpush.bf16.msra.mxu0 %v1070
    %1413 = vmatpush.bf16.msra.mxu0 %v1066
    %1414 = vmatpush.bf16.msra.mxu0 %v1062
    %1415 = vmatpush.bf16.msra.mxu0 %v1058
    %1416 = vmatpush.bf16.msra.mxu0 %v1054
    %1417 = vmatpush.bf16.msra.mxu0 %v1050
    %1418 = vmatmul.bf16.gmra.mxu0 %v149
    %v1419 = vpop.f32.mrf.mxu0
    %v1420 = vadd.f32 %v1401, %v1419
    %v1421 = vpop.f32.mrf.mxu0
    %v1422 = vadd.f32 %v1403, %v1421
    %1423 = vmatmul.bf16.gmra.mxu0 %v156
    %v1424 = vpop.f32.mrf.mxu0
    %v1425 = vadd.f32 %v1406, %v1424
    %v1426 = vpop.f32.mrf.mxu0
    %v1427 = vadd.f32 %v1408, %v1426
    %1428 = vdwg.mxu0
    %1429 = vmatpush.bf16.msra.mxu0 %v1110
    %1430 = vmatpush.bf16.msra.mxu0 %v1106
    %1431 = vmatpush.bf16.msra.mxu0 %v1102
    %1432 = vmatpush.bf16.msra.mxu0 %v1098
    %1433 = vmatpush.bf16.msra.mxu0 %v1094
    %1434 = vmatpush.bf16.msra.mxu0 %v1090
    %1435 = vmatpush.bf16.msra.mxu0 %v1086
    %1436 = vmatpush.bf16.msra.mxu0 %v1082
    %1437 = vmatmul.bf16.gmra.mxu0 %v150
    %v1438 = vpop.f32.mrf.mxu0
    %v1439 = vadd.f32 %v1420, %v1438
    %v1440 = vpop.f32.mrf.mxu0
    %v1441 = vadd.f32 %v1422, %v1440
    %1442 = vmatmul.bf16.gmra.mxu0 %v157
    %v1443 = vpop.f32.mrf.mxu0
    %v1444 = vadd.f32 %v1425, %v1443
    %v1445 = vpop.f32.mrf.mxu0
    %v1446 = vadd.f32 %v1427, %v1445
    %1447 = vdwg.mxu0
    %1448 = vmatpush.bf16.msra.mxu0 %v1142
    %1449 = vmatpush.bf16.msra.mxu0 %v1138
    %1450 = vmatpush.bf16.msra.mxu0 %v1134
    %1451 = vmatpush.bf16.msra.mxu0 %v1130
    %1452 = vmatpush.bf16.msra.mxu0 %v1126
    %1453 = vmatpush.bf16.msra.mxu0 %v1122
    %1454 = vmatpush.bf16.msra.mxu0 %v1118
    %1455 = vmatpush.bf16.msra.mxu0 %v1114
    %1456 = vmatmul.bf16.gmra.mxu0 %v151
    %v1457 = vpop.f32.mrf.mxu0
    %v1458 = vadd.f32 %v1439, %v1457
    %v1459 = vpop.f32.mrf.mxu0
    %v1460 = vadd.f32 %v1441, %v1459
    %1461 = vmatmul.bf16.gmra.mxu0 %v158
    %v1462 = vpop.f32.mrf.mxu0
    %v1463 = vadd.f32 %v1444, %v1462
    %v1464 = vpop.f32.mrf.mxu0
    %v1465 = vadd.f32 %v1446, %v1464
    %1466 = vdwg.mxu0
    %1467 = vmatpush.bf16.msra.mxu0 0
    %1468 = vmatpush.bf16.msra.mxu0 0
    %1469 = vmatpush.bf16.msra.mxu0 0
    %1470 = vmatpush.bf16.msra.mxu0 0
    %1471 = vmatpush.bf16.msra.mxu0 0
    %1472 = vmatpush.bf16.msra.mxu0 0
    %1473 = vmatpush.bf16.msra.mxu0 0
    %1474 = vmatpush.bf16.msra.mxu0 %v1146
    %1475 = vmatmul.bf16.gmra.mxu0 %v1348
    %v1476 = vpop.f32.mrf.mxu0
    %v1477 = vadd.f32 %v1458, %v1476
    %v1478 = vpop.f32.mrf.mxu0
    %v1479 = vadd.f32 %v1460, %v1478
    %1480 = vmatmul.bf16.gmra.mxu0 %v1351
    %v1481 = vpop.f32.mrf.mxu0
    %v1482 = vadd.f32 %v1463, %v1481
    %v1483 = vpop.f32.mrf.mxu0
    %v1484 = vadd.f32 %v1465, %v1483
    %1485 = vdwg.mxu0
    %1486 = vmatpush.bf16.msra.mxu0 %v983
    %1487 = vmatpush.bf16.msra.mxu0 %v979
    %1488 = vmatpush.bf16.msra.mxu0 %v975
    %1489 = vmatpush.bf16.msra.mxu0 %v971
    %1490 = vmatpush.bf16.msra.mxu0 %v967
    %1491 = vmatpush.bf16.msra.mxu0 %v963
    %1492 = vmatpush.bf16.msra.mxu0 %v959
    %1493 = vmatpush.bf16.msra.mxu0 %v955
    %1494 = vmatmul.bf16.gmra.mxu0 %v146
    %v1495 = vpop.f32.mrf.mxu0
    %v1496 = vadd.f32 %v359, %v1495
    %v1497 = vpop.f32.mrf.mxu0
    %v1498 = vadd.f32 %v359, %v1497
    %1499 = vmatmul.bf16.gmra.mxu0 %v153
    %v1500 = vpop.f32.mrf.mxu0
    %v1501 = vadd.f32 %v359, %v1500
    %v1502 = vpop.f32.mrf.mxu0
    %v1503 = vadd.f32 %v359, %v1502
    %1504 = vdwg.mxu0
    %1505 = vmatpush.bf16.msra.mxu0 %v1015
    %1506 = vmatpush.bf16.msra.mxu0 %v1011
    %1507 = vmatpush.bf16.msra.mxu0 %v1007
    %1508 = vmatpush.bf16.msra.mxu0 %v1003
    %1509 = vmatpush.bf16.msra.mxu0 %v999
    %1510 = vmatpush.bf16.msra.mxu0 %v995
    %1511 = vmatpush.bf16.msra.mxu0 %v991
    %1512 = vmatpush.bf16.msra.mxu0 %v987
    %1513 = vmatmul.bf16.gmra.mxu0 %v147
    %v1514 = vpop.f32.mrf.mxu0
    %v1515 = vadd.f32 %v1496, %v1514
    %v1516 = vpop.f32.mrf.mxu0
    %v1517 = vadd.f32 %v1498, %v1516
    %1518 = vmatmul.bf16.gmra.mxu0 %v154
    %v1519 = vpop.f32.mrf.mxu0
    %v1520 = vadd.f32 %v1501, %v1519
    %v1521 = vpop.f32.mrf.mxu0
    %v1522 = vadd.f32 %v1503, %v1521
    %1523 = vdwg.mxu0
    %1524 = vmatpush.bf16.msra.mxu0 %v1047
    %1525 = vmatpush.bf16.msra.mxu0 %v1043
    %1526 = vmatpush.bf16.msra.mxu0 %v1039
    %1527 = vmatpush.bf16.msra.mxu0 %v1035
    %1528 = vmatpush.bf16.msra.mxu0 %v1031
    %1529 = vmatpush.bf16.msra.mxu0 %v1027
    %1530 = vmatpush.bf16.msra.mxu0 %v1023
    %1531 = vmatpush.bf16.msra.mxu0 %v1019
    %1532 = vmatmul.bf16.gmra.mxu0 %v148
    %v1533 = vpop.f32.mrf.mxu0
    %v1534 = vadd.f32 %v1515, %v1533
    %v1535 = vpop.f32.mrf.mxu0
    %v1536 = vadd.f32 %v1517, %v1535
    %1537 = vmatmul.bf16.gmra.mxu0 %v155
    %v1538 = vpop.f32.mrf.mxu0
    %v1539 = vadd.f32 %v1520, %v1538
    %v1540 = vpop.f32.mrf.mxu0
    %v1541 = vadd.f32 %v1522, %v1540
    %1542 = vdwg.mxu0
    %1543 = vmatpush.bf16.msra.mxu0 %v1079
    %1544 = vmatpush.bf16.msra.mxu0 %v1075
    %1545 = vmatpush.bf16.msra.mxu0 %v1071
    %1546 = vmatpush.bf16.msra.mxu0 %v1067
    %1547 = vmatpush.bf16.msra.mxu0 %v1063
    %1548 = vmatpush.bf16.msra.mxu0 %v1059
    %1549 = vmatpush.bf16.msra.mxu0 %v1055
    %1550 = vmatpush.bf16.msra.mxu0 %v1051
    %1551 = vmatmul.bf16.gmra.mxu0 %v149
    %v1552 = vpop.f32.mrf.mxu0
    %v1553 = vadd.f32 %v1534, %v1552
    %v1554 = vpop.f32.mrf.mxu0
    %v1555 = vadd.f32 %v1536, %v1554
    %1556 = vmatmul.bf16.gmra.mxu0 %v156
    %v1557 = vpop.f32.mrf.mxu0
    %v1558 = vadd.f32 %v1539, %v1557
    %v1559 = vpop.f32.mrf.mxu0
    %v1560 = vadd.f32 %v1541, %v1559
    %1561 = vdwg.mxu0
    %1562 = vmatpush.bf16.msra.mxu0 %v1111
    %1563 = vmatpush.bf16.msra.mxu0 %v1107
    %1564 = vmatpush.bf16.msra.mxu0 %v1103
    %1565 = vmatpush.bf16.msra.mxu0 %v1099
    %1566 = vmatpush.bf16.msra.mxu0 %v1095
    %1567 = vmatpush.bf16.msra.mxu0 %v1091
    %1568 = vmatpush.bf16.msra.mxu0 %v1087
    %1569 = vmatpush.bf16.msra.mxu0 %v1083
    %1570 = vmatmul.bf16.gmra.mxu0 %v150
    %v1571 = vpop.f32.mrf.mxu0
    %v1572 = vadd.f32 %v1553, %v1571
    %v1573 = vpop.f32.mrf.mxu0
    %v1574 = vadd.f32 %v1555, %v1573
    %1575 = vmatmul.bf16.gmra.mxu0 %v157
    %v1576 = vpop.f32.mrf.mxu0
    %v1577 = vadd.f32 %v1558, %v1576
    %v1578 = vpop.f32.mrf.mxu0
    %v1579 = vadd.f32 %v1560, %v1578
    %1580 = vdwg.mxu0
    %1581 = vmatpush.bf16.msra.mxu0 %v1143
    %1582 = vmatpush.bf16.msra.mxu0 %v1139
    %1583 = vmatpush.bf16.msra.mxu0 %v1135
    %1584 = vmatpush.bf16.msra.mxu0 %v1131
    %1585 = vmatpush.bf16.msra.mxu0 %v1127
    %1586 = vmatpush.bf16.msra.mxu0 %v1123
    %1587 = vmatpush.bf16.msra.mxu0 %v1119
    %1588 = vmatpush.bf16.msra.mxu0 %v1115
    %1589 = vmatmul.bf16.gmra.mxu0 %v151
    %v1590 = vpop.f32.mrf.mxu0
    %v1591 = vadd.f32 %v1572, %v1590
    %v1592 = vpop.f32.mrf.mxu0
    %v1593 = vadd.f32 %v1574, %v1592
    %1594 = vmatmul.bf16.gmra.mxu0 %v158
    %v1595 = vpop.f32.mrf.mxu0
    %v1596 = vadd.f32 %v1577, %v1595
    %v1597 = vpop.f32.mrf.mxu0
    %v1598 = vadd.f32 %v1579, %v1597
    %1599 = vdwg.mxu0
    %1600 = vmatpush.bf16.msra.mxu0 0
    %1601 = vmatpush.bf16.msra.mxu0 0
    %1602 = vmatpush.bf16.msra.mxu0 0
    %1603 = vmatpush.bf16.msra.mxu0 0
    %1604 = vmatpush.bf16.msra.mxu0 0
    %1605 = vmatpush.bf16.msra.mxu0 0
    %1606 = vmatpush.bf16.msra.mxu0 0
    %1607 = vmatpush.bf16.msra.mxu0 %v1147
    %1608 = vmatmul.bf16.gmra.mxu0 %v1348
    %v1609 = vpop.f32.mrf.mxu0
    %v1610 = vadd.f32 %v1591, %v1609
    %v1611 = vpop.f32.mrf.mxu0
    %v1612 = vadd.f32 %v1593, %v1611
    %1613 = vmatmul.bf16.gmra.mxu0 %v1351
    %v1614 = vpop.f32.mrf.mxu0
    %v1615 = vadd.f32 %v1596, %v1614
    %v1616 = vpop.f32.mrf.mxu0
    %v1617 = vadd.f32 %v1598, %v1616
    %1618 = vdwg.mxu0
    %1619 = vmatpush.bf16.msra.mxu0 %v984
    %1620 = vmatpush.bf16.msra.mxu0 %v980
    %1621 = vmatpush.bf16.msra.mxu0 %v976
    %1622 = vmatpush.bf16.msra.mxu0 %v972
    %1623 = vmatpush.bf16.msra.mxu0 %v968
    %1624 = vmatpush.bf16.msra.mxu0 %v964
    %1625 = vmatpush.bf16.msra.mxu0 %v960
    %1626 = vmatpush.bf16.msra.mxu0 %v956
    %1627 = vmatmul.bf16.gmra.mxu0 %v146
    %v1628 = vpop.f32.mrf.mxu0
    %v1629 = vadd.f32 %v360, %v1628
    %v1630 = vpop.f32.mrf.mxu0
    %v1631 = vadd.f32 %v360, %v1630
    %1632 = vmatmul.bf16.gmra.mxu0 %v153
    %v1633 = vpop.f32.mrf.mxu0
    %v1634 = vadd.f32 %v360, %v1633
    %v1635 = vpop.f32.mrf.mxu0
    %v1636 = vadd.f32 %v360, %v1635
    %1637 = vdwg.mxu0
    %1638 = vmatpush.bf16.msra.mxu0 %v1016
    %1639 = vmatpush.bf16.msra.mxu0 %v1012
    %1640 = vmatpush.bf16.msra.mxu0 %v1008
    %1641 = vmatpush.bf16.msra.mxu0 %v1004
    %1642 = vmatpush.bf16.msra.mxu0 %v1000
    %1643 = vmatpush.bf16.msra.mxu0 %v996
    %1644 = vmatpush.bf16.msra.mxu0 %v992
    %1645 = vmatpush.bf16.msra.mxu0 %v988
    %1646 = vmatmul.bf16.gmra.mxu0 %v147
    %v1647 = vpop.f32.mrf.mxu0
    %v1648 = vadd.f32 %v1629, %v1647
    %v1649 = vpop.f32.mrf.mxu0
    %v1650 = vadd.f32 %v1631, %v1649
    %1651 = vmatmul.bf16.gmra.mxu0 %v154
    %v1652 = vpop.f32.mrf.mxu0
    %v1653 = vadd.f32 %v1634, %v1652
    %v1654 = vpop.f32.mrf.mxu0
    %v1655 = vadd.f32 %v1636, %v1654
    %1656 = vdwg.mxu0
    %1657 = vmatpush.bf16.msra.mxu0 %v1048
    %1658 = vmatpush.bf16.msra.mxu0 %v1044
    %1659 = vmatpush.bf16.msra.mxu0 %v1040
    %1660 = vmatpush.bf16.msra.mxu0 %v1036
    %1661 = vmatpush.bf16.msra.mxu0 %v1032
    %1662 = vmatpush.bf16.msra.mxu0 %v1028
    %1663 = vmatpush.bf16.msra.mxu0 %v1024
    %1664 = vmatpush.bf16.msra.mxu0 %v1020
    %1665 = vmatmul.bf16.gmra.mxu0 %v148
    %v1666 = vpop.f32.mrf.mxu0
    %v1667 = vadd.f32 %v1648, %v1666
    %v1668 = vpop.f32.mrf.mxu0
    %v1669 = vadd.f32 %v1650, %v1668
    %1670 = vmatmul.bf16.gmra.mxu0 %v155
    %v1671 = vpop.f32.mrf.mxu0
    %v1672 = vadd.f32 %v1653, %v1671
    %v1673 = vpop.f32.mrf.mxu0
    %v1674 = vadd.f32 %v1655, %v1673
    %1675 = vdwg.mxu0
    %1676 = vmatpush.bf16.msra.mxu0 %v1080
    %1677 = vmatpush.bf16.msra.mxu0 %v1076
    %1678 = vmatpush.bf16.msra.mxu0 %v1072
    %1679 = vmatpush.bf16.msra.mxu0 %v1068
    %1680 = vmatpush.bf16.msra.mxu0 %v1064
    %1681 = vmatpush.bf16.msra.mxu0 %v1060
    %1682 = vmatpush.bf16.msra.mxu0 %v1056
    %1683 = vmatpush.bf16.msra.mxu0 %v1052
    %1684 = vmatmul.bf16.gmra.mxu0 %v149
    %v1685 = vpop.f32.mrf.mxu0
    %v1686 = vadd.f32 %v1667, %v1685
    %v1687 = vpop.f32.mrf.mxu0
    %v1688 = vadd.f32 %v1669, %v1687
    %1689 = vmatmul.bf16.gmra.mxu0 %v156
    %v1690 = vpop.f32.mrf.mxu0
    %v1691 = vadd.f32 %v1672, %v1690
    %v1692 = vpop.f32.mrf.mxu0
    %v1693 = vadd.f32 %v1674, %v1692
    %1694 = vdwg.mxu0
    %1695 = vmatpush.bf16.msra.mxu0 %v1112
    %1696 = vmatpush.bf16.msra.mxu0 %v1108
    %1697 = vmatpush.bf16.msra.mxu0 %v1104
    %1698 = vmatpush.bf16.msra.mxu0 %v1100
    %1699 = vmatpush.bf16.msra.mxu0 %v1096
    %1700 = vmatpush.bf16.msra.mxu0 %v1092
    %1701 = vmatpush.bf16.msra.mxu0 %v1088
    %1702 = vmatpush.bf16.msra.mxu0 %v1084
    %1703 = vmatmul.bf16.gmra.mxu0 %v150
    %v1704 = vpop.f32.mrf.mxu0
    %v1705 = vadd.f32 %v1686, %v1704
    %v1706 = vpop.f32.mrf.mxu0
    %v1707 = vadd.f32 %v1688, %v1706
    %1708 = vmatmul.bf16.gmra.mxu0 %v157
    %v1709 = vpop.f32.mrf.mxu0
    %v1710 = vadd.f32 %v1691, %v1709
    %v1711 = vpop.f32.mrf.mxu0
    %v1712 = vadd.f32 %v1693, %v1711
    %1713 = vdwg.mxu0
    %1714 = vmatpush.bf16.msra.mxu0 %v1144
    %1715 = vmatpush.bf16.msra.mxu0 %v1140
    %1716 = vmatpush.bf16.msra.mxu0 %v1136
    %1717 = vmatpush.bf16.msra.mxu0 %v1132
    %1718 = vmatpush.bf16.msra.mxu0 %v1128
    %1719 = vmatpush.bf16.msra.mxu0 %v1124
    %1720 = vmatpush.bf16.msra.mxu0 %v1120
    %1721 = vmatpush.bf16.msra.mxu0 %v1116
    %1722 = vmatmul.bf16.gmra.mxu0 %v151
    %v1723 = vpop.f32.mrf.mxu0
    %v1724 = vadd.f32 %v1705, %v1723
    %v1725 = vpop.f32.mrf.mxu0
    %v1726 = vadd.f32 %v1707, %v1725
    %1727 = vmatmul.bf16.gmra.mxu0 %v158
    %v1728 = vpop.f32.mrf.mxu0
    %v1729 = vadd.f32 %v1710, %v1728
    %v1730 = vpop.f32.mrf.mxu0
    %v1731 = vadd.f32 %v1712, %v1730
    %1732 = vdwg.mxu0
    %1733 = vmatpush.bf16.msra.mxu0 0
    %1734 = vmatpush.bf16.msra.mxu0 0
    %1735 = vmatpush.bf16.msra.mxu0 0
    %1736 = vmatpush.bf16.msra.mxu0 0
    %1737 = vmatpush.bf16.msra.mxu0 0
    %1738 = vmatpush.bf16.msra.mxu0 0
    %1739 = vmatpush.bf16.msra.mxu0 0
    %1740 = vmatpush.bf16.msra.mxu0 %v1148
    %1741 = vmatmul.bf16.gmra.mxu0 %v1348
    %v1742 = vpop.f32.mrf.mxu0
    %v1743 = vadd.f32 %v1724, %v1742
    %v1744 = vpop.f32.mrf.mxu0
    %v1745 = vadd.f32 %v1726, %v1744
    %1746 = vmatmul.bf16.gmra.mxu0 %v1351
    %v1747 = vpop.f32.mrf.mxu0
    %v1748 = vadd.f32 %v1729, %v1747
    %v1749 = vpop.f32.mrf.mxu0
    %v1750 = vadd.f32 %v1731, %v1749
    %1751 = vdwg.mxu0
    %1752 = vmatpush.bf16.msra.mxu0 %v985
    %1753 = vmatpush.bf16.msra.mxu0 %v981
    %1754 = vmatpush.bf16.msra.mxu0 %v977
    %1755 = vmatpush.bf16.msra.mxu0 %v973
    %1756 = vmatpush.bf16.msra.mxu0 %v969
    %1757 = vmatpush.bf16.msra.mxu0 %v965
    %1758 = vmatpush.bf16.msra.mxu0 %v961
    %1759 = vmatpush.bf16.msra.mxu0 %v957
    %1760 = vmatmul.bf16.gmra.mxu0 %v146
    %v1761 = vpop.f32.mrf.mxu0
    %v1762 = vadd.f32 %v361, %v1761
    %v1763 = vpop.f32.mrf.mxu0
    %v1764 = vadd.f32 %v361, %v1763
    %1765 = vmatmul.bf16.gmra.mxu0 %v153
    %v1766 = vpop.f32.mrf.mxu0
    %v1767 = vadd.f32 %v361, %v1766
    %v1768 = vpop.f32.mrf.mxu0
    %v1769 = vadd.f32 %v361, %v1768
    %1770 = vdwg.mxu0
    %1771 = vmatpush.bf16.msra.mxu0 %v1017
    %1772 = vmatpush.bf16.msra.mxu0 %v1013
    %1773 = vmatpush.bf16.msra.mxu0 %v1009
    %1774 = vmatpush.bf16.msra.mxu0 %v1005
    %1775 = vmatpush.bf16.msra.mxu0 %v1001
    %1776 = vmatpush.bf16.msra.mxu0 %v997
    %1777 = vmatpush.bf16.msra.mxu0 %v993
    %1778 = vmatpush.bf16.msra.mxu0 %v989
    %1779 = vmatmul.bf16.gmra.mxu0 %v147
    %v1780 = vpop.f32.mrf.mxu0
    %v1781 = vadd.f32 %v1762, %v1780
    %v1782 = vpop.f32.mrf.mxu0
    %v1783 = vadd.f32 %v1764, %v1782
    %1784 = vmatmul.bf16.gmra.mxu0 %v154
    %v1785 = vpop.f32.mrf.mxu0
    %v1786 = vadd.f32 %v1767, %v1785
    %v1787 = vpop.f32.mrf.mxu0
    %v1788 = vadd.f32 %v1769, %v1787
    %1789 = vdwg.mxu0
    %1790 = vmatpush.bf16.msra.mxu0 %v1049
    %1791 = vmatpush.bf16.msra.mxu0 %v1045
    %1792 = vmatpush.bf16.msra.mxu0 %v1041
    %1793 = vmatpush.bf16.msra.mxu0 %v1037
    %1794 = vmatpush.bf16.msra.mxu0 %v1033
    %1795 = vmatpush.bf16.msra.mxu0 %v1029
    %1796 = vmatpush.bf16.msra.mxu0 %v1025
    %1797 = vmatpush.bf16.msra.mxu0 %v1021
    %1798 = vmatmul.bf16.gmra.mxu0 %v148
    %v1799 = vpop.f32.mrf.mxu0
    %v1800 = vadd.f32 %v1781, %v1799
    %v1801 = vpop.f32.mrf.mxu0
    %v1802 = vadd.f32 %v1783, %v1801
    %1803 = vmatmul.bf16.gmra.mxu0 %v155
    %v1804 = vpop.f32.mrf.mxu0
    %v1805 = vadd.f32 %v1786, %v1804
    %v1806 = vpop.f32.mrf.mxu0
    %v1807 = vadd.f32 %v1788, %v1806
    %1808 = vdwg.mxu0
    %1809 = vmatpush.bf16.msra.mxu0 %v1081
    %1810 = vmatpush.bf16.msra.mxu0 %v1077
    %1811 = vmatpush.bf16.msra.mxu0 %v1073
    %1812 = vmatpush.bf16.msra.mxu0 %v1069
    %1813 = vmatpush.bf16.msra.mxu0 %v1065
    %1814 = vmatpush.bf16.msra.mxu0 %v1061
    %1815 = vmatpush.bf16.msra.mxu0 %v1057
    %1816 = vmatpush.bf16.msra.mxu0 %v1053
    %1817 = vmatmul.bf16.gmra.mxu0 %v149
    %v1818 = vpop.f32.mrf.mxu0
    %v1819 = vadd.f32 %v1800, %v1818
    %v1820 = vpop.f32.mrf.mxu0
    %v1821 = vadd.f32 %v1802, %v1820
    %1822 = vmatmul.bf16.gmra.mxu0 %v156
    %v1823 = vpop.f32.mrf.mxu0
    %v1824 = vadd.f32 %v1805, %v1823
    %v1825 = vpop.f32.mrf.mxu0
    %v1826 = vadd.f32 %v1807, %v1825
    %1827 = vdwg.mxu0
    %1828 = vmatpush.bf16.msra.mxu0 %v1113
    %1829 = vmatpush.bf16.msra.mxu0 %v1109
    %1830 = vmatpush.bf16.msra.mxu0 %v1105
    %1831 = vmatpush.bf16.msra.mxu0 %v1101
    %1832 = vmatpush.bf16.msra.mxu0 %v1097
    %1833 = vmatpush.bf16.msra.mxu0 %v1093
    %1834 = vmatpush.bf16.msra.mxu0 %v1089
    %1835 = vmatpush.bf16.msra.mxu0 %v1085
    %1836 = vmatmul.bf16.gmra.mxu0 %v150
    %v1837 = vpop.f32.mrf.mxu0
    %v1838 = vadd.f32 %v1819, %v1837
    %v1839 = vpop.f32.mrf.mxu0
    %v1840 = vadd.f32 %v1821, %v1839
    %1841 = vmatmul.bf16.gmra.mxu0 %v157
    %v1842 = vpop.f32.mrf.mxu0
    %v1843 = vadd.f32 %v1824, %v1842
    %v1844 = vpop.f32.mrf.mxu0
    %v1845 = vadd.f32 %v1826, %v1844
    %1846 = vdwg.mxu0
    %1847 = vmatpush.bf16.msra.mxu0 %v1145
    %1848 = vmatpush.bf16.msra.mxu0 %v1141
    %1849 = vmatpush.bf16.msra.mxu0 %v1137
    %1850 = vmatpush.bf16.msra.mxu0 %v1133
    %1851 = vmatpush.bf16.msra.mxu0 %v1129
    %1852 = vmatpush.bf16.msra.mxu0 %v1125
    %1853 = vmatpush.bf16.msra.mxu0 %v1121
    %1854 = vmatpush.bf16.msra.mxu0 %v1117
    %1855 = vmatmul.bf16.gmra.mxu0 %v151
    %v1856 = vpop.f32.mrf.mxu0
    %v1857 = vadd.f32 %v1838, %v1856
    %v1858 = vpop.f32.mrf.mxu0
    %v1859 = vadd.f32 %v1840, %v1858
    %1860 = vmatmul.bf16.gmra.mxu0 %v158
    %v1861 = vpop.f32.mrf.mxu0
    %v1862 = vadd.f32 %v1843, %v1861
    %v1863 = vpop.f32.mrf.mxu0
    %v1864 = vadd.f32 %v1845, %v1863
    %1865 = vdwg.mxu0
    %1866 = vmatpush.bf16.msra.mxu0 0
    %1867 = vmatpush.bf16.msra.mxu0 0
    %1868 = vmatpush.bf16.msra.mxu0 0
    %1869 = vmatpush.bf16.msra.mxu0 0
    %1870 = vmatpush.bf16.msra.mxu0 0
    %1871 = vmatpush.bf16.msra.mxu0 0
    %1872 = vmatpush.bf16.msra.mxu0 0
    %1873 = vmatpush.bf16.msra.mxu0 %v1149
    %1874 = vmatmul.bf16.gmra.mxu0 %v1348
    %v1875 = vpop.f32.mrf.mxu0
    %v1876 = vadd.f32 %v1857, %v1875
    %v1877 = vpop.f32.mrf.mxu0
    %v1878 = vadd.f32 %v1859, %v1877
    %1879 = vmatmul.bf16.gmra.mxu0 %v1351
    %v1880 = vpop.f32.mrf.mxu0
    %v1881 = vadd.f32 %v1862, %v1880
    %v1882 = vpop.f32.mrf.mxu0
    %v1883 = vadd.f32 %v1864, %v1882
    %1884 = vdwg.mxu0
    %v1885 = vmax.f32 %v1477, 0.0
    %v1886 = vmax.f32 %v1610, 0.0
    %v1887 = vmax.f32 %v1743, 0.0
    %v1888 = vmax.f32 %v1876, 0.0
    %v1889 = vmax.f32 %v1479, 0.0
    %v1890 = vmax.f32 %v1612, 0.0
    %v1891 = vmax.f32 %v1745, 0.0
    %v1892 = vmax.f32 %v1878, 0.0
    %v1893 = vmax.f32 %v1482, 0.0
    %v1894 = vmax.f32 %v1615, 0.0
    %v1895 = vmax.f32 %v1748, 0.0
    %v1896 = vmax.f32 %v1881, 0.0
    %v1897 = vmax.f32 %v1484, 0.0
    %v1898 = vmax.f32 %v1617, 0.0
    %v1899 = vmax.f32 %v1750, 0.0
    %v1900 = vmax.f32 %v1883, 0.0
    %v1901 = vpack.c.bf16 %v1889, %v1885
    %v1902 = vpack.c.bf16 %v1890, %v1886
    %v1903 = vpack.c.bf16 %v1891, %v1887
    %v1904 = vpack.c.bf16 %v1892, %v1888
    %v1905 = vpack.c.bf16 %v1897, %v1893
    %v1906 = vpack.c.bf16 %v1898, %v1894
    %v1907 = vpack.c.bf16 %v1899, %v1895
    %v1908 = vpack.c.bf16 %v1900, %v1896
    %v1909 = vld [vmem:[#allocation8] sm:$0xff]
    %v1910 = vld [vmem:[#allocation8 + $0x8] sm:$0xff]
    %v1911 = vld [vmem:[#allocation8 + $0x10] sm:$0xff]
    %v1912 = vld [vmem:[#allocation8 + $0x18] sm:$0xff]
    %v1913 = vld [vmem:[#allocation8 + $0x20] sm:$0xff]
    %v1914 = vld [vmem:[#allocation8 + $0x28] sm:$0xff]
    %v1915 = vld [vmem:[#allocation8 + $0x30] sm:$0xff]
    %v1916 = vld [vmem:[#allocation8 + $0x38] sm:$0xff]
    %v1917 = vld [vmem:[#allocation8 + $0x40] sm:$0xff]
    %v1918 = vld [vmem:[#allocation8 + $0x48] sm:$0xff]
    %v1919 = vld [vmem:[#allocation8 + $0x50] sm:$0xff]
    %v1920 = vld [vmem:[#allocation8 + $0x58] sm:$0xff]
    %v1921 = vld [vmem:[#allocation8 + $0x60] sm:$0xff]
    %v1922 = vld [vmem:[#allocation8 + $0x68] sm:$0xff]
    %v1923 = vld [vmem:[#allocation8 + $0x70] sm:$0xff]
    %v1924 = vld [vmem:[#allocation8 + $0x78] sm:$0xff]
    %v1925 = vld [vmem:[#allocation8 + $0x80] sm:$0xff]
    %v1926 = vld [vmem:[#allocation8 + $0x88] sm:$0xff]
    %v1927 = vld [vmem:[#allocation8 + $0x90] sm:$0xff]
    %v1928 = vld [vmem:[#allocation8 + $0x98] sm:$0xff]
    %v1929 = vld [vmem:[#allocation8 + $0xa0] sm:$0xff]
    %v1930 = vld [vmem:[#allocation8 + $0xa8] sm:$0xff]
    %v1931 = vld [vmem:[#allocation8 + $0xb0] sm:$0xff]
    %v1932 = vld [vmem:[#allocation8 + $0xb8] sm:$0xff]
    %v1933 = vld [vmem:[#allocation8 + $0xc0] sm:$0xff]
    %v1934 = vld [vmem:[#allocation8 + $0xc8] sm:$0xff]
    %v1935 = vld [vmem:[#allocation8 + $0xd0] sm:$0xff]
    %v1936 = vld [vmem:[#allocation8 + $0xd8] sm:$0xff]
    %v1937 = vld [vmem:[#allocation8 + $0xe0] sm:$0xff]
    %v1938 = vld [vmem:[#allocation8 + $0xe8] sm:$0xff]
    %v1939 = vld [vmem:[#allocation8 + $0xf0] sm:$0xff]
    %v1940 = vld [vmem:[#allocation8 + $0xf8] sm:$0xff]
    %v1941 = vld [vmem:[#allocation8 + $0x100] sm:$0xff]
    %v1942 = vld [vmem:[#allocation8 + $0x108] sm:$0xff]
    %v1943 = vld [vmem:[#allocation8 + $0x110] sm:$0xff]
    %v1944 = vld [vmem:[#allocation8 + $0x118] sm:$0xff]
    %v1945 = vld [vmem:[#allocation8 + $0x120] sm:$0xff]
    %v1946 = vld [vmem:[#allocation8 + $0x128] sm:$0xff]
    %v1947 = vld [vmem:[#allocation8 + $0x130] sm:$0xff]
    %v1948 = vld [vmem:[#allocation8 + $0x138] sm:$0xff]
    %v1949 = vld [vmem:[#allocation8 + $0x140] sm:$0xff]
    %v1950 = vld [vmem:[#allocation8 + $0x148] sm:$0xff]
    %v1951 = vld [vmem:[#allocation8 + $0x150] sm:$0xff]
    %v1952 = vld [vmem:[#allocation8 + $0x158] sm:$0xff]
    %v1953 = vld [vmem:[#allocation8 + $0x160] sm:$0xff]
    %v1954 = vld [vmem:[#allocation8 + $0x168] sm:$0xff]
    %v1955 = vld [vmem:[#allocation8 + $0x170] sm:$0xff]
    %v1956 = vld [vmem:[#allocation8 + $0x178] sm:$0xff]
    %v1957 = vld [vmem:[#allocation8 + $0x180] sm:$0xff]
    %v1958 = vld [vmem:[#allocation8 + $0x188] sm:$0xff]
    %v1959 = vld [vmem:[#allocation8 + $0x190] sm:$0xff]
    %v1960 = vld [vmem:[#allocation8 + $0x198] sm:$0xff]
    %v1961 = vld [vmem:[#allocation8 + $0x1a0] sm:$0xff]
    %v1962 = vld [vmem:[#allocation8 + $0x1a8] sm:$0xff]
    %v1963 = vld [vmem:[#allocation8 + $0x1b0] sm:$0xff]
    %v1964 = vld [vmem:[#allocation8 + $0x1b8] sm:$0xff]
    %v1965 = vld [vmem:[#allocation8 + $0x1c0] sm:$0xff]
    %v1966 = vld [vmem:[#allocation8 + $0x1c8] sm:$0xff]
    %v1967 = vld [vmem:[#allocation8 + $0x1d0] sm:$0xff]
    %v1968 = vld [vmem:[#allocation8 + $0x1d8] sm:$0xff]
    %v1969 = vld [vmem:[#allocation8 + $0x1e0] sm:$0xff]
    %v1970 = vld [vmem:[#allocation8 + $0x1e8] sm:$0xff]
    %v1971 = vld [vmem:[#allocation8 + $0x1f0] sm:$0xff]
    %v1972 = vld [vmem:[#allocation8 + $0x1f8] sm:$0xff]
    %v1973 = vld [vmem:[#allocation8 + $0x200] sm:$0xff]
    %v1974 = vld [vmem:[#allocation8 + $0x208] sm:$0xff]
    %v1975 = vld [vmem:[#allocation8 + $0x210] sm:$0xff]
    %v1976 = vld [vmem:[#allocation8 + $0x218] sm:$0xff]
    %v1977 = vld [vmem:[#allocation8 + $0x220] sm:$0xff]
    %v1978 = vld [vmem:[#allocation8 + $0x228] sm:$0xff]
    %v1979 = vld [vmem:[#allocation8 + $0x230] sm:$0xff]
    %v1980 = vld [vmem:[#allocation8 + $0x238] sm:$0xff]
    %v1981 = vld [vmem:[#allocation8 + $0x240] sm:$0xff]
    %v1982 = vld [vmem:[#allocation8 + $0x248] sm:$0xff]
    %v1983 = vld [vmem:[#allocation8 + $0x250] sm:$0xff]
    %v1984 = vld [vmem:[#allocation8 + $0x258] sm:$0xff]
    %v1985 = vld [vmem:[#allocation8 + $0x260] sm:$0xff]
    %v1986 = vld [vmem:[#allocation8 + $0x268] sm:$0xff]
    %v1987 = vld [vmem:[#allocation8 + $0x270] sm:$0xff]
    %v1988 = vld [vmem:[#allocation8 + $0x278] sm:$0xff]
    %v1989 = vld [vmem:[#allocation8 + $0x280] sm:$0xff]
    %v1990 = vld [vmem:[#allocation8 + $0x288] sm:$0xff]
    %v1991 = vld [vmem:[#allocation8 + $0x290] sm:$0xff]
    %v1992 = vld [vmem:[#allocation8 + $0x298] sm:$0xff]
    %v1993 = vld [vmem:[#allocation8 + $0x2a0] sm:$0xff]
    %v1994 = vld [vmem:[#allocation8 + $0x2a8] sm:$0xff]
    %v1995 = vld [vmem:[#allocation8 + $0x2b0] sm:$0xff]
    %v1996 = vld [vmem:[#allocation8 + $0x2b8] sm:$0xff]
    %v1997 = vld [vmem:[#allocation8 + $0x2c0] sm:$0xff]
    %v1998 = vld [vmem:[#allocation8 + $0x2c8] sm:$0xff]
    %v1999 = vld [vmem:[#allocation8 + $0x2d0] sm:$0xff]
    %v2000 = vld [vmem:[#allocation8 + $0x2d8] sm:$0xff]
    %v2001 = vld [vmem:[#allocation8 + $0x2e0] sm:$0xff]
    %v2002 = vld [vmem:[#allocation8 + $0x2e8] sm:$0xff]
    %v2003 = vld [vmem:[#allocation8 + $0x2f0] sm:$0xff]
    %v2004 = vld [vmem:[#allocation8 + $0x2f8] sm:$0xff]
    %v2005 = vld [vmem:[#allocation8 + $0x300] sm:$0xff]
    %v2006 = vld [vmem:[#allocation8 + $0x308] sm:$0xff]
    %v2007 = vld [vmem:[#allocation8 + $0x310] sm:$0xff]
    %v2008 = vld [vmem:[#allocation8 + $0x318] sm:$0xff]
    %v2009 = vld [vmem:[#allocation8 + $0x320] sm:$0xff]
    %v2010 = vld [vmem:[#allocation8 + $0x328] sm:$0xff]
    %v2011 = vld [vmem:[#allocation8 + $0x330] sm:$0xff]
    %v2012 = vld [vmem:[#allocation8 + $0x338] sm:$0xff]
    %v2013 = vld [vmem:[#allocation8 + $0x340] sm:$0xff]
    %v2014 = vld [vmem:[#allocation8 + $0x348] sm:$0xff]
    %v2015 = vld [vmem:[#allocation8 + $0x350] sm:$0xff]
    %v2016 = vld [vmem:[#allocation8 + $0x358] sm:$0xff]
    %v2017 = vld [vmem:[#allocation8 + $0x360] sm:$0xff]
    %v2018 = vld [vmem:[#allocation8 + $0x368] sm:$0xff]
    %v2019 = vld [vmem:[#allocation8 + $0x370] sm:$0xff]
    %v2020 = vld [vmem:[#allocation8 + $0x378] sm:$0xff]
    %v2021 = vld [vmem:[#allocation8 + $0x380] sm:$0xff]
    %v2022 = vld [vmem:[#allocation8 + $0x388] sm:$0xff]
    %v2023 = vld [vmem:[#allocation8 + $0x390] sm:$0xff]
    %v2024 = vld [vmem:[#allocation8 + $0x398] sm:$0xff]
    %v2025 = vld [vmem:[#allocation8 + $0x3a0] sm:$0xff]
    %v2026 = vld [vmem:[#allocation8 + $0x3a8] sm:$0xff]
    %v2027 = vld [vmem:[#allocation8 + $0x3b0] sm:$0xff]
    %v2028 = vld [vmem:[#allocation8 + $0x3b8] sm:$0xff]
    %v2029 = vld [vmem:[#allocation8 + $0x3c0] sm:$0xff]
    %v2030 = vld [vmem:[#allocation8 + $0x3c8] sm:$0xff]
    %v2031 = vld [vmem:[#allocation8 + $0x3d0] sm:$0xff]
    %v2032 = vld [vmem:[#allocation8 + $0x3d8] sm:$0xff]
    %v2033 = vld [vmem:[#allocation8 + $0x3e0] sm:$0xff]
    %v2034 = vld [vmem:[#allocation8 + $0x3e8] sm:$0xff]
    %v2035 = vld [vmem:[#allocation8 + $0x3f0] sm:$0xff]
    %v2036 = vld [vmem:[#allocation8 + $0x3f8] sm:$0xff]
    %v2037 = vld [vmem:[#allocation10] sm:$0xf]
    %v2039 = vperm.slane %v2037, 0
    %v2040 = vperm.slane %v2037, 1
    %v2041 = vperm.slane %v2037, 2
    %v2042 = vperm.slane %v2037, 3
    %v2175 = vunpack.c.l.b16 %v1909
    %v2176 = vunpack.c.h.b16 %v1909
    %v2177 = vunpack.c.l.b16 %v1910
    %v2178 = vunpack.c.h.b16 %v1910
    %v2179 = vunpack.c.l.b16 %v1911
    %v2180 = vunpack.c.h.b16 %v1911
    %v2181 = vunpack.c.l.b16 %v1912
    %v2182 = vunpack.c.h.b16 %v1912
    %v2183 = vunpack.c.l.b16 %v1913
    %v2184 = vunpack.c.h.b16 %v1913
    %v2185 = vunpack.c.l.b16 %v1914
    %v2186 = vunpack.c.h.b16 %v1914
    %v2187 = vunpack.c.l.b16 %v1915
    %v2188 = vunpack.c.h.b16 %v1915
    %v2189 = vunpack.c.l.b16 %v1916
    %v2190 = vunpack.c.h.b16 %v1916
    %v2191 = vunpack.c.l.b16 %v1917
    %v2192 = vunpack.c.h.b16 %v1917
    %v2193 = vunpack.c.l.b16 %v1918
    %v2194 = vunpack.c.h.b16 %v1918
    %v2195 = vunpack.c.l.b16 %v1919
    %v2196 = vunpack.c.h.b16 %v1919
    %v2197 = vunpack.c.l.b16 %v1920
    %v2198 = vunpack.c.h.b16 %v1920
    %v2199 = vunpack.c.l.b16 %v1921
    %v2200 = vunpack.c.h.b16 %v1921
    %v2201 = vunpack.c.l.b16 %v1922
    %v2202 = vunpack.c.h.b16 %v1922
    %v2203 = vunpack.c.l.b16 %v1923
    %v2204 = vunpack.c.h.b16 %v1923
    %v2205 = vunpack.c.l.b16 %v1924
    %v2206 = vunpack.c.h.b16 %v1924
    %v2207 = vunpack.c.l.b16 %v1925
    %v2208 = vunpack.c.h.b16 %v1925
    %v2209 = vunpack.c.l.b16 %v1926
    %v2210 = vunpack.c.h.b16 %v1926
    %v2211 = vunpack.c.l.b16 %v1927
    %v2212 = vunpack.c.h.b16 %v1927
    %v2213 = vunpack.c.l.b16 %v1928
    %v2214 = vunpack.c.h.b16 %v1928
    %v2215 = vunpack.c.l.b16 %v1929
    %v2216 = vunpack.c.h.b16 %v1929
    %v2217 = vunpack.c.l.b16 %v1930
    %v2218 = vunpack.c.h.b16 %v1930
    %v2219 = vunpack.c.l.b16 %v1931
    %v2220 = vunpack.c.h.b16 %v1931
    %v2221 = vunpack.c.l.b16 %v1932
    %v2222 = vunpack.c.h.b16 %v1932
    %v2223 = vunpack.c.l.b16 %v1933
    %v2224 = vunpack.c.h.b16 %v1933
    %v2225 = vunpack.c.l.b16 %v1934
    %v2226 = vunpack.c.h.b16 %v1934
    %v2227 = vunpack.c.l.b16 %v1935
    %v2228 = vunpack.c.h.b16 %v1935
    %v2229 = vunpack.c.l.b16 %v1936
    %v2230 = vunpack.c.h.b16 %v1936
    %v2231 = vunpack.c.l.b16 %v1937
    %v2232 = vunpack.c.h.b16 %v1937
    %v2233 = vunpack.c.l.b16 %v1938
    %v2234 = vunpack.c.h.b16 %v1938
    %v2235 = vunpack.c.l.b16 %v1939
    %v2236 = vunpack.c.h.b16 %v1939
    %v2237 = vunpack.c.l.b16 %v1940
    %v2238 = vunpack.c.h.b16 %v1940
    %v2239 = vunpack.c.l.b16 %v1941
    %v2240 = vunpack.c.h.b16 %v1941
    %v2241 = vunpack.c.l.b16 %v1942
    %v2242 = vunpack.c.h.b16 %v1942
    %v2243 = vunpack.c.l.b16 %v1943
    %v2244 = vunpack.c.h.b16 %v1943
    %v2245 = vunpack.c.l.b16 %v1944
    %v2246 = vunpack.c.h.b16 %v1944
    %v2247 = vunpack.c.l.b16 %v1945
    %v2248 = vunpack.c.h.b16 %v1945
    %v2249 = vunpack.c.l.b16 %v1946
    %v2250 = vunpack.c.h.b16 %v1946
    %v2251 = vunpack.c.l.b16 %v1947
    %v2252 = vunpack.c.h.b16 %v1947
    %v2253 = vunpack.c.l.b16 %v1948
    %v2254 = vunpack.c.h.b16 %v1948
    %v2255 = vunpack.c.l.b16 %v1949
    %v2256 = vunpack.c.h.b16 %v1949
    %v2257 = vunpack.c.l.b16 %v1950
    %v2258 = vunpack.c.h.b16 %v1950
    %v2259 = vunpack.c.l.b16 %v1951
    %v2260 = vunpack.c.h.b16 %v1951
    %v2261 = vunpack.c.l.b16 %v1952
    %v2262 = vunpack.c.h.b16 %v1952
    %v2263 = vunpack.c.l.b16 %v1953
    %v2264 = vunpack.c.h.b16 %v1953
    %v2265 = vunpack.c.l.b16 %v1954
    %v2266 = vunpack.c.h.b16 %v1954
    %v2267 = vunpack.c.l.b16 %v1955
    %v2268 = vunpack.c.h.b16 %v1955
    %v2269 = vunpack.c.l.b16 %v1956
    %v2270 = vunpack.c.h.b16 %v1956
    %v2271 = vunpack.c.l.b16 %v1957
    %v2272 = vunpack.c.h.b16 %v1957
    %v2273 = vunpack.c.l.b16 %v1958
    %v2274 = vunpack.c.h.b16 %v1958
    %v2275 = vunpack.c.l.b16 %v1959
    %v2276 = vunpack.c.h.b16 %v1959
    %v2277 = vunpack.c.l.b16 %v1960
    %v2278 = vunpack.c.h.b16 %v1960
    %v2279 = vunpack.c.l.b16 %v1961
    %v2280 = vunpack.c.h.b16 %v1961
    %v2281 = vunpack.c.l.b16 %v1962
    %v2282 = vunpack.c.h.b16 %v1962
    %v2283 = vunpack.c.l.b16 %v1963
    %v2284 = vunpack.c.h.b16 %v1963
    %v2285 = vunpack.c.l.b16 %v1964
    %v2286 = vunpack.c.h.b16 %v1964
    %v2287 = vunpack.c.l.b16 %v1965
    %v2288 = vunpack.c.h.b16 %v1965
    %v2289 = vunpack.c.l.b16 %v1966
    %v2290 = vunpack.c.h.b16 %v1966
    %v2291 = vunpack.c.l.b16 %v1967
    %v2292 = vunpack.c.h.b16 %v1967
    %v2293 = vunpack.c.l.b16 %v1968
    %v2294 = vunpack.c.h.b16 %v1968
    %v2295 = vunpack.c.l.b16 %v1969
    %v2296 = vunpack.c.h.b16 %v1969
    %v2297 = vunpack.c.l.b16 %v1970
    %v2298 = vunpack.c.h.b16 %v1970
    %v2299 = vunpack.c.l.b16 %v1971
    %v2300 = vunpack.c.h.b16 %v1971
    %v2301 = vunpack.c.l.b16 %v1972
    %v2302 = vunpack.c.h.b16 %v1972
    %v2303 = vunpack.c.l.b16 %v1973
    %v2304 = vunpack.c.h.b16 %v1973
    %v2305 = vunpack.c.l.b16 %v1974
    %v2306 = vunpack.c.h.b16 %v1974
    %v2307 = vunpack.c.l.b16 %v1975
    %v2308 = vunpack.c.h.b16 %v1975
    %v2309 = vunpack.c.l.b16 %v1976
    %v2310 = vunpack.c.h.b16 %v1976
    %v2311 = vunpack.c.l.b16 %v1977
    %v2312 = vunpack.c.h.b16 %v1977
    %v2313 = vunpack.c.l.b16 %v1978
    %v2314 = vunpack.c.h.b16 %v1978
    %v2315 = vunpack.c.l.b16 %v1979
    %v2316 = vunpack.c.h.b16 %v1979
    %v2317 = vunpack.c.l.b16 %v1980
    %v2318 = vunpack.c.h.b16 %v1980
    %v2319 = vunpack.c.l.b16 %v1981
    %v2320 = vunpack.c.h.b16 %v1981
    %v2321 = vunpack.c.l.b16 %v1982
    %v2322 = vunpack.c.h.b16 %v1982
    %v2323 = vunpack.c.l.b16 %v1983
    %v2324 = vunpack.c.h.b16 %v1983
    %v2325 = vunpack.c.l.b16 %v1984
    %v2326 = vunpack.c.h.b16 %v1984
    %v2327 = vunpack.c.l.b16 %v1985
    %v2328 = vunpack.c.h.b16 %v1985
    %v2329 = vunpack.c.l.b16 %v1986
    %v2330 = vunpack.c.h.b16 %v1986
    %v2331 = vunpack.c.l.b16 %v1987
    %v2332 = vunpack.c.h.b16 %v1987
    %v2333 = vunpack.c.l.b16 %v1988
    %v2334 = vunpack.c.h.b16 %v1988
    %v2335 = vunpack.c.l.b16 %v1989
    %v2336 = vunpack.c.h.b16 %v1989
    %v2337 = vunpack.c.l.b16 %v1990
    %v2338 = vunpack.c.h.b16 %v1990
    %v2339 = vunpack.c.l.b16 %v1991
    %v2340 = vunpack.c.h.b16 %v1991
    %v2341 = vunpack.c.l.b16 %v1992
    %v2342 = vunpack.c.h.b16 %v1992
    %v2343 = vunpack.c.l.b16 %v1993
    %v2344 = vunpack.c.h.b16 %v1993
    %v2345 = vunpack.c.l.b16 %v1994
    %v2346 = vunpack.c.h.b16 %v1994
    %v2347 = vunpack.c.l.b16 %v1995
    %v2348 = vunpack.c.h.b16 %v1995
    %v2349 = vunpack.c.l.b16 %v1996
    %v2350 = vunpack.c.h.b16 %v1996
    %v2351 = vunpack.c.l.b16 %v1997
    %v2352 = vunpack.c.h.b16 %v1997
    %v2353 = vunpack.c.l.b16 %v1998
    %v2354 = vunpack.c.h.b16 %v1998
    %v2355 = vunpack.c.l.b16 %v1999
    %v2356 = vunpack.c.h.b16 %v1999
    %v2357 = vunpack.c.l.b16 %v2000
    %v2358 = vunpack.c.h.b16 %v2000
    %v2359 = vunpack.c.l.b16 %v2001
    %v2360 = vunpack.c.h.b16 %v2001
    %v2361 = vunpack.c.l.b16 %v2002
    %v2362 = vunpack.c.h.b16 %v2002
    %v2363 = vunpack.c.l.b16 %v2003
    %v2364 = vunpack.c.h.b16 %v2003
    %v2365 = vunpack.c.l.b16 %v2004
    %v2366 = vunpack.c.h.b16 %v2004
    %v2367 = vunpack.c.l.b16 %v2005
    %v2368 = vunpack.c.h.b16 %v2005
    %v2369 = vunpack.c.l.b16 %v2006
    %v2370 = vunpack.c.h.b16 %v2006
    %v2371 = vunpack.c.l.b16 %v2007
    %v2372 = vunpack.c.h.b16 %v2007
    %v2373 = vunpack.c.l.b16 %v2008
    %v2374 = vunpack.c.h.b16 %v2008
    %v2375 = vunpack.c.l.b16 %v2009
    %v2376 = vunpack.c.h.b16 %v2009
    %v2377 = vunpack.c.l.b16 %v2010
    %v2378 = vunpack.c.h.b16 %v2010
    %v2379 = vunpack.c.l.b16 %v2011
    %v2380 = vunpack.c.h.b16 %v2011
    %v2381 = vunpack.c.l.b16 %v2012
    %v2382 = vunpack.c.h.b16 %v2012
    %v2383 = vunpack.c.l.b16 %v2013
    %v2384 = vunpack.c.h.b16 %v2013
    %v2385 = vunpack.c.l.b16 %v2014
    %v2386 = vunpack.c.h.b16 %v2014
    %v2387 = vunpack.c.l.b16 %v2015
    %v2388 = vunpack.c.h.b16 %v2015
    %v2389 = vunpack.c.l.b16 %v2016
    %v2390 = vunpack.c.h.b16 %v2016
    %v2391 = vunpack.c.l.b16 %v2017
    %v2392 = vunpack.c.h.b16 %v2017
    %v2393 = vunpack.c.l.b16 %v2018
    %v2394 = vunpack.c.h.b16 %v2018
    %v2395 = vunpack.c.l.b16 %v2019
    %v2396 = vunpack.c.h.b16 %v2019
    %v2397 = vunpack.c.l.b16 %v2020
    %v2398 = vunpack.c.h.b16 %v2020
    %v2399 = vunpack.c.l.b16 %v2021
    %v2400 = vunpack.c.h.b16 %v2021
    %v2401 = vunpack.c.l.b16 %v2022
    %v2402 = vunpack.c.h.b16 %v2022
    %v2403 = vunpack.c.l.b16 %v2023
    %v2404 = vunpack.c.h.b16 %v2023
    %v2405 = vunpack.c.l.b16 %v2024
    %v2406 = vunpack.c.h.b16 %v2024
    %v2407 = vunpack.c.l.b16 %v2025
    %v2408 = vunpack.c.h.b16 %v2025
    %v2409 = vunpack.c.l.b16 %v2026
    %v2410 = vunpack.c.h.b16 %v2026
    %v2411 = vunpack.c.l.b16 %v2027
    %v2412 = vunpack.c.h.b16 %v2027
    %v2413 = vunpack.c.l.b16 %v2028
    %v2414 = vunpack.c.h.b16 %v2028
    %v2415 = vunpack.c.l.b16 %v2029
    %v2416 = vunpack.c.h.b16 %v2029
    %v2417 = vunpack.c.l.b16 %v2030
    %v2418 = vunpack.c.h.b16 %v2030
    %v2419 = vunpack.c.l.b16 %v2031
    %v2420 = vunpack.c.h.b16 %v2031
    %v2421 = vunpack.c.l.b16 %v2032
    %v2422 = vunpack.c.h.b16 %v2032
    %v2423 = vunpack.c.l.b16 %v2033
    %v2424 = vunpack.c.h.b16 %v2033
    %v2425 = vunpack.c.l.b16 %v2034
    %v2426 = vunpack.c.h.b16 %v2034
    %v2427 = vunpack.c.l.b16 %v2035
    %v2428 = vunpack.c.h.b16 %v2035
    %v2429 = vunpack.c.l.b16 %v2036
    %v2430 = vunpack.c.h.b16 %v2036
    %v2431 = vpack.c.b16 %v2179, %v2175
    %v2432 = vpack.c.b16 %v2180, %v2176
    %v2433 = vpack.c.b16 %v2181, %v2177
    %v2434 = vpack.c.b16 %v2182, %v2178
    %v2435 = vpack.c.b16 %v2187, %v2183
    %v2436 = vpack.c.b16 %v2188, %v2184
    %v2437 = vpack.c.b16 %v2189, %v2185
    %v2438 = vpack.c.b16 %v2190, %v2186
    %v2439 = vpack.c.b16 %v2195, %v2191
    %v2440 = vpack.c.b16 %v2196, %v2192
    %v2441 = vpack.c.b16 %v2197, %v2193
    %v2442 = vpack.c.b16 %v2198, %v2194
    %v2443 = vpack.c.b16 %v2203, %v2199
    %v2444 = vpack.c.b16 %v2204, %v2200
    %v2445 = vpack.c.b16 %v2205, %v2201
    %v2446 = vpack.c.b16 %v2206, %v2202
    %v2447 = vpack.c.b16 %v2211, %v2207
    %v2448 = vpack.c.b16 %v2212, %v2208
    %v2449 = vpack.c.b16 %v2213, %v2209
    %v2450 = vpack.c.b16 %v2214, %v2210
    %v2451 = vpack.c.b16 %v2219, %v2215
    %v2452 = vpack.c.b16 %v2220, %v2216
    %v2453 = vpack.c.b16 %v2221, %v2217
    %v2454 = vpack.c.b16 %v2222, %v2218
    %v2455 = vpack.c.b16 %v2227, %v2223
    %v2456 = vpack.c.b16 %v2228, %v2224
    %v2457 = vpack.c.b16 %v2229, %v2225
    %v2458 = vpack.c.b16 %v2230, %v2226
    %v2459 = vpack.c.b16 %v2235, %v2231
    %v2460 = vpack.c.b16 %v2236, %v2232
    %v2461 = vpack.c.b16 %v2237, %v2233
    %v2462 = vpack.c.b16 %v2238, %v2234
    %v2463 = vpack.c.b16 %v2243, %v2239
    %v2464 = vpack.c.b16 %v2244, %v2240
    %v2465 = vpack.c.b16 %v2245, %v2241
    %v2466 = vpack.c.b16 %v2246, %v2242
    %v2467 = vpack.c.b16 %v2251, %v2247
    %v2468 = vpack.c.b16 %v2252, %v2248
    %v2469 = vpack.c.b16 %v2253, %v2249
    %v2470 = vpack.c.b16 %v2254, %v2250
    %v2471 = vpack.c.b16 %v2259, %v2255
    %v2472 = vpack.c.b16 %v2260, %v2256
    %v2473 = vpack.c.b16 %v2261, %v2257
    %v2474 = vpack.c.b16 %v2262, %v2258
    %v2475 = vpack.c.b16 %v2267, %v2263
    %v2476 = vpack.c.b16 %v2268, %v2264
    %v2477 = vpack.c.b16 %v2269, %v2265
    %v2478 = vpack.c.b16 %v2270, %v2266
    %v2479 = vpack.c.b16 %v2275, %v2271
    %v2480 = vpack.c.b16 %v2276, %v2272
    %v2481 = vpack.c.b16 %v2277, %v2273
    %v2482 = vpack.c.b16 %v2278, %v2274
    %v2483 = vpack.c.b16 %v2283, %v2279
    %v2484 = vpack.c.b16 %v2284, %v2280
    %v2485 = vpack.c.b16 %v2285, %v2281
    %v2486 = vpack.c.b16 %v2286, %v2282
    %v2487 = vpack.c.b16 %v2291, %v2287
    %v2488 = vpack.c.b16 %v2292, %v2288
    %v2489 = vpack.c.b16 %v2293, %v2289
    %v2490 = vpack.c.b16 %v2294, %v2290
    %v2491 = vpack.c.b16 %v2299, %v2295
    %v2492 = vpack.c.b16 %v2300, %v2296
    %v2493 = vpack.c.b16 %v2301, %v2297
    %v2494 = vpack.c.b16 %v2302, %v2298
    %v2495 = vpack.c.b16 %v2307, %v2303
    %v2496 = vpack.c.b16 %v2308, %v2304
    %v2497 = vpack.c.b16 %v2309, %v2305
    %v2498 = vpack.c.b16 %v2310, %v2306
    %v2499 = vpack.c.b16 %v2315, %v2311
    %v2500 = vpack.c.b16 %v2316, %v2312
    %v2501 = vpack.c.b16 %v2317, %v2313
    %v2502 = vpack.c.b16 %v2318, %v2314
    %v2503 = vpack.c.b16 %v2323, %v2319
    %v2504 = vpack.c.b16 %v2324, %v2320
    %v2505 = vpack.c.b16 %v2325, %v2321
    %v2506 = vpack.c.b16 %v2326, %v2322
    %v2507 = vpack.c.b16 %v2331, %v2327
    %v2508 = vpack.c.b16 %v2332, %v2328
    %v2509 = vpack.c.b16 %v2333, %v2329
    %v2510 = vpack.c.b16 %v2334, %v2330
    %v2511 = vpack.c.b16 %v2339, %v2335
    %v2512 = vpack.c.b16 %v2340, %v2336
    %v2513 = vpack.c.b16 %v2341, %v2337
    %v2514 = vpack.c.b16 %v2342, %v2338
    %v2515 = vpack.c.b16 %v2347, %v2343
    %v2516 = vpack.c.b16 %v2348, %v2344
    %v2517 = vpack.c.b16 %v2349, %v2345
    %v2518 = vpack.c.b16 %v2350, %v2346
    %v2519 = vpack.c.b16 %v2355, %v2351
    %v2520 = vpack.c.b16 %v2356, %v2352
    %v2521 = vpack.c.b16 %v2357, %v2353
    %v2522 = vpack.c.b16 %v2358, %v2354
    %v2523 = vpack.c.b16 %v2363, %v2359
    %v2524 = vpack.c.b16 %v2364, %v2360
    %v2525 = vpack.c.b16 %v2365, %v2361
    %v2526 = vpack.c.b16 %v2366, %v2362
    %v2527 = vpack.c.b16 %v2371, %v2367
    %v2528 = vpack.c.b16 %v2372, %v2368
    %v2529 = vpack.c.b16 %v2373, %v2369
    %v2530 = vpack.c.b16 %v2374, %v2370
    %v2531 = vpack.c.b16 %v2379, %v2375
    %v2532 = vpack.c.b16 %v2380, %v2376
    %v2533 = vpack.c.b16 %v2381, %v2377
    %v2534 = vpack.c.b16 %v2382, %v2378
    %v2535 = vpack.c.b16 %v2387, %v2383
    %v2536 = vpack.c.b16 %v2388, %v2384
    %v2537 = vpack.c.b16 %v2389, %v2385
    %v2538 = vpack.c.b16 %v2390, %v2386
    %v2539 = vpack.c.b16 %v2395, %v2391
    %v2540 = vpack.c.b16 %v2396, %v2392
    %v2541 = vpack.c.b16 %v2397, %v2393
    %v2542 = vpack.c.b16 %v2398, %v2394
    %v2543 = vpack.c.b16 %v2403, %v2399
    %v2544 = vpack.c.b16 %v2404, %v2400
    %v2545 = vpack.c.b16 %v2405, %v2401
    %v2546 = vpack.c.b16 %v2406, %v2402
    %v2547 = vpack.c.b16 %v2411, %v2407
    %v2548 = vpack.c.b16 %v2412, %v2408
    %v2549 = vpack.c.b16 %v2413, %v2409
    %v2550 = vpack.c.b16 %v2414, %v2410
    %v2551 = vpack.c.b16 %v2419, %v2415
    %v2552 = vpack.c.b16 %v2420, %v2416
    %v2553 = vpack.c.b16 %v2421, %v2417
    %v2554 = vpack.c.b16 %v2422, %v2418
    %v2555 = vpack.c.b16 %v2427, %v2423
    %v2556 = vpack.c.b16 %v2428, %v2424
    %v2557 = vpack.c.b16 %v2429, %v2425
    %v2558 = vpack.c.b16 %v2430, %v2426
    %2687 = vmatpush.bf16.msra.mxu0 %v2459
    %2688 = vmatpush.bf16.msra.mxu0 %v2455
    %2689 = vmatpush.bf16.msra.mxu0 %v2451
    %2690 = vmatpush.bf16.msra.mxu0 %v2447
    %2691 = vmatpush.bf16.msra.mxu0 %v2443
    %2692 = vmatpush.bf16.msra.mxu0 %v2439
    %2693 = vmatpush.bf16.msra.mxu0 %v2435
    %2694 = vmatpush.bf16.msra.mxu0 %v2431
    %2695 = vmatmul.bf16.gmra.mxu0 %v1901
    %v2696 = vpop.f32.mrf.mxu0
    %v2697 = vadd.f32 %v2039, %v2696
    %v2698 = vpop.f32.mrf.mxu0
    %v2699 = vadd.f32 %v2039, %v2698
    %2700 = vmatmul.bf16.gmra.mxu0 %v1905
    %v2701 = vpop.f32.mrf.mxu0
    %v2702 = vadd.f32 %v2039, %v2701
    %v2703 = vpop.f32.mrf.mxu0
    %v2704 = vadd.f32 %v2039, %v2703
    %2705 = vdwg.mxu0
    %2706 = vmatpush.bf16.msra.mxu0 %v2491
    %2707 = vmatpush.bf16.msra.mxu0 %v2487
    %2708 = vmatpush.bf16.msra.mxu0 %v2483
    %2709 = vmatpush.bf16.msra.mxu0 %v2479
    %2710 = vmatpush.bf16.msra.mxu0 %v2475
    %2711 = vmatpush.bf16.msra.mxu0 %v2471
    %2712 = vmatpush.bf16.msra.mxu0 %v2467
    %2713 = vmatpush.bf16.msra.mxu0 %v2463
    %2714 = vmatmul.bf16.gmra.mxu0 %v1902
    %v2715 = vpop.f32.mrf.mxu0
    %v2716 = vadd.f32 %v2697, %v2715
    %v2717 = vpop.f32.mrf.mxu0
    %v2718 = vadd.f32 %v2699, %v2717
    %2719 = vmatmul.bf16.gmra.mxu0 %v1906
    %v2720 = vpop.f32.mrf.mxu0
    %v2721 = vadd.f32 %v2702, %v2720
    %v2722 = vpop.f32.mrf.mxu0
    %v2723 = vadd.f32 %v2704, %v2722
    %2724 = vdwg.mxu0
    %2725 = vmatpush.bf16.msra.mxu0 %v2523
    %2726 = vmatpush.bf16.msra.mxu0 %v2519
    %2727 = vmatpush.bf16.msra.mxu0 %v2515
    %2728 = vmatpush.bf16.msra.mxu0 %v2511
    %2729 = vmatpush.bf16.msra.mxu0 %v2507
    %2730 = vmatpush.bf16.msra.mxu0 %v2503
    %2731 = vmatpush.bf16.msra.mxu0 %v2499
    %2732 = vmatpush.bf16.msra.mxu0 %v2495
    %2733 = vmatmul.bf16.gmra.mxu0 %v1903
    %v2734 = vpop.f32.mrf.mxu0
    %v2735 = vadd.f32 %v2716, %v2734
    %v2736 = vpop.f32.mrf.mxu0
    %v2737 = vadd.f32 %v2718, %v2736
    %2738 = vmatmul.bf16.gmra.mxu0 %v1907
    %v2739 = vpop.f32.mrf.mxu0
    %v2740 = vadd.f32 %v2721, %v2739
    %v2741 = vpop.f32.mrf.mxu0
    %v2742 = vadd.f32 %v2723, %v2741
    %2743 = vdwg.mxu0
    %2744 = vmatpush.bf16.msra.mxu0 %v2555
    %2745 = vmatpush.bf16.msra.mxu0 %v2551
    %2746 = vmatpush.bf16.msra.mxu0 %v2547
    %2747 = vmatpush.bf16.msra.mxu0 %v2543
    %2748 = vmatpush.bf16.msra.mxu0 %v2539
    %2749 = vmatpush.bf16.msra.mxu0 %v2535
    %2750 = vmatpush.bf16.msra.mxu0 %v2531
    %2751 = vmatpush.bf16.msra.mxu0 %v2527
    %2752 = vmatmul.bf16.gmra.mxu0 %v1904
    %v2753 = vpop.f32.mrf.mxu0
    %v2754 = vadd.f32 %v2735, %v2753
    %v2755 = vpop.f32.mrf.mxu0
    %v2756 = vadd.f32 %v2737, %v2755
    %2757 = vmatmul.bf16.gmra.mxu0 %v1908
    %v2758 = vpop.f32.mrf.mxu0
    %v2759 = vadd.f32 %v2740, %v2758
    %v2760 = vpop.f32.mrf.mxu0
    %v2761 = vadd.f32 %v2742, %v2760
    %2762 = vdwg.mxu0
    %2763 = vmatpush.bf16.msra.mxu0 %v2460
    %2764 = vmatpush.bf16.msra.mxu0 %v2456
    %2765 = vmatpush.bf16.msra.mxu0 %v2452
    %2766 = vmatpush.bf16.msra.mxu0 %v2448
    %2767 = vmatpush.bf16.msra.mxu0 %v2444
    %2768 = vmatpush.bf16.msra.mxu0 %v2440
    %2769 = vmatpush.bf16.msra.mxu0 %v2436
    %2770 = vmatpush.bf16.msra.mxu0 %v2432
    %2771 = vmatmul.bf16.gmra.mxu0 %v1901
    %v2772 = vpop.f32.mrf.mxu0
    %v2773 = vadd.f32 %v2040, %v2772
    %v2774 = vpop.f32.mrf.mxu0
    %v2775 = vadd.f32 %v2040, %v2774
    %2776 = vmatmul.bf16.gmra.mxu0 %v1905
    %v2777 = vpop.f32.mrf.mxu0
    %v2778 = vadd.f32 %v2040, %v2777
    %v2779 = vpop.f32.mrf.mxu0
    %v2780 = vadd.f32 %v2040, %v2779
    %2781 = vdwg.mxu0
    %2782 = vmatpush.bf16.msra.mxu0 %v2492
    %2783 = vmatpush.bf16.msra.mxu0 %v2488
    %2784 = vmatpush.bf16.msra.mxu0 %v2484
    %2785 = vmatpush.bf16.msra.mxu0 %v2480
    %2786 = vmatpush.bf16.msra.mxu0 %v2476
    %2787 = vmatpush.bf16.msra.mxu0 %v2472
    %2788 = vmatpush.bf16.msra.mxu0 %v2468
    %2789 = vmatpush.bf16.msra.mxu0 %v2464
    %2790 = vmatmul.bf16.gmra.mxu0 %v1902
    %v2791 = vpop.f32.mrf.mxu0
    %v2792 = vadd.f32 %v2773, %v2791
    %v2793 = vpop.f32.mrf.mxu0
    %v2794 = vadd.f32 %v2775, %v2793
    %2795 = vmatmul.bf16.gmra.mxu0 %v1906
    %v2796 = vpop.f32.mrf.mxu0
    %v2797 = vadd.f32 %v2778, %v2796
    %v2798 = vpop.f32.mrf.mxu0
    %v2799 = vadd.f32 %v2780, %v2798
    %2800 = vdwg.mxu0
    %2801 = vmatpush.bf16.msra.mxu0 %v2524
    %2802 = vmatpush.bf16.msra.mxu0 %v2520
    %2803 = vmatpush.bf16.msra.mxu0 %v2516
    %2804 = vmatpush.bf16.msra.mxu0 %v2512
    %2805 = vmatpush.bf16.msra.mxu0 %v2508
    %2806 = vmatpush.bf16.msra.mxu0 %v2504
    %2807 = vmatpush.bf16.msra.mxu0 %v2500
    %2808 = vmatpush.bf16.msra.mxu0 %v2496
    %2809 = vmatmul.bf16.gmra.mxu0 %v1903
    %v2810 = vpop.f32.mrf.mxu0
    %v2811 = vadd.f32 %v2792, %v2810
    %v2812 = vpop.f32.mrf.mxu0
    %v2813 = vadd.f32 %v2794, %v2812
    %2814 = vmatmul.bf16.gmra.mxu0 %v1907
    %v2815 = vpop.f32.mrf.mxu0
    %v2816 = vadd.f32 %v2797, %v2815
    %v2817 = vpop.f32.mrf.mxu0
    %v2818 = vadd.f32 %v2799, %v2817
    %2819 = vdwg.mxu0
    %2820 = vmatpush.bf16.msra.mxu0 %v2556
    %2821 = vmatpush.bf16.msra.mxu0 %v2552
    %2822 = vmatpush.bf16.msra.mxu0 %v2548
    %2823 = vmatpush.bf16.msra.mxu0 %v2544
    %2824 = vmatpush.bf16.msra.mxu0 %v2540
    %2825 = vmatpush.bf16.msra.mxu0 %v2536
    %2826 = vmatpush.bf16.msra.mxu0 %v2532
    %2827 = vmatpush.bf16.msra.mxu0 %v2528
    %2828 = vmatmul.bf16.gmra.mxu0 %v1904
    %v2829 = vpop.f32.mrf.mxu0
    %v2830 = vadd.f32 %v2811, %v2829
    %v2831 = vpop.f32.mrf.mxu0
    %v2832 = vadd.f32 %v2813, %v2831
    %2833 = vmatmul.bf16.gmra.mxu0 %v1908
    %v2834 = vpop.f32.mrf.mxu0
    %v2835 = vadd.f32 %v2816, %v2834
    %v2836 = vpop.f32.mrf.mxu0
    %v2837 = vadd.f32 %v2818, %v2836
    %2838 = vdwg.mxu0
    %2839 = vmatpush.bf16.msra.mxu0 %v2461
    %2840 = vmatpush.bf16.msra.mxu0 %v2457
    %2841 = vmatpush.bf16.msra.mxu0 %v2453
    %2842 = vmatpush.bf16.msra.mxu0 %v2449
    %2843 = vmatpush.bf16.msra.mxu0 %v2445
    %2844 = vmatpush.bf16.msra.mxu0 %v2441
    %2845 = vmatpush.bf16.msra.mxu0 %v2437
    %2846 = vmatpush.bf16.msra.mxu0 %v2433
    %2847 = vmatmul.bf16.gmra.mxu0 %v1901
    %v2848 = vpop.f32.mrf.mxu0
    %v2849 = vadd.f32 %v2041, %v2848
    %v2850 = vpop.f32.mrf.mxu0
    %v2851 = vadd.f32 %v2041, %v2850
    %2852 = vmatmul.bf16.gmra.mxu0 %v1905
    %v2853 = vpop.f32.mrf.mxu0
    %v2854 = vadd.f32 %v2041, %v2853
    %v2855 = vpop.f32.mrf.mxu0
    %v2856 = vadd.f32 %v2041, %v2855
    %2857 = vdwg.mxu0
    %2858 = vmatpush.bf16.msra.mxu0 %v2493
    %2859 = vmatpush.bf16.msra.mxu0 %v2489
    %2860 = vmatpush.bf16.msra.mxu0 %v2485
    %2861 = vmatpush.bf16.msra.mxu0 %v2481
    %2862 = vmatpush.bf16.msra.mxu0 %v2477
    %2863 = vmatpush.bf16.msra.mxu0 %v2473
    %2864 = vmatpush.bf16.msra.mxu0 %v2469
    %2865 = vmatpush.bf16.msra.mxu0 %v2465
    %2866 = vmatmul.bf16.gmra.mxu0 %v1902
    %v2867 = vpop.f32.mrf.mxu0
    %v2868 = vadd.f32 %v2849, %v2867
    %v2869 = vpop.f32.mrf.mxu0
    %v2870 = vadd.f32 %v2851, %v2869
    %2871 = vmatmul.bf16.gmra.mxu0 %v1906
    %v2872 = vpop.f32.mrf.mxu0
    %v2873 = vadd.f32 %v2854, %v2872
    %v2874 = vpop.f32.mrf.mxu0
    %v2875 = vadd.f32 %v2856, %v2874
    %2876 = vdwg.mxu0
    %2877 = vmatpush.bf16.msra.mxu0 %v2525
    %2878 = vmatpush.bf16.msra.mxu0 %v2521
    %2879 = vmatpush.bf16.msra.mxu0 %v2517
    %2880 = vmatpush.bf16.msra.mxu0 %v2513
    %2881 = vmatpush.bf16.msra.mxu0 %v2509
    %2882 = vmatpush.bf16.msra.mxu0 %v2505
    %2883 = vmatpush.bf16.msra.mxu0 %v2501
    %2884 = vmatpush.bf16.msra.mxu0 %v2497
    %2885 = vmatmul.bf16.gmra.mxu0 %v1903
    %v2886 = vpop.f32.mrf.mxu0
    %v2887 = vadd.f32 %v2868, %v2886
    %v2888 = vpop.f32.mrf.mxu0
    %v2889 = vadd.f32 %v2870, %v2888
    %2890 = vmatmul.bf16.gmra.mxu0 %v1907
    %v2891 = vpop.f32.mrf.mxu0
    %v2892 = vadd.f32 %v2873, %v2891
    %v2893 = vpop.f32.mrf.mxu0
    %v2894 = vadd.f32 %v2875, %v2893
    %2895 = vdwg.mxu0
    %2896 = vmatpush.bf16.msra.mxu0 %v2557
    %2897 = vmatpush.bf16.msra.mxu0 %v2553
    %2898 = vmatpush.bf16.msra.mxu0 %v2549
    %2899 = vmatpush.bf16.msra.mxu0 %v2545
    %2900 = vmatpush.bf16.msra.mxu0 %v2541
    %2901 = vmatpush.bf16.msra.mxu0 %v2537
    %2902 = vmatpush.bf16.msra.mxu0 %v2533
    %2903 = vmatpush.bf16.msra.mxu0 %v2529
    %2904 = vmatmul.bf16.gmra.mxu0 %v1904
    %v2905 = vpop.f32.mrf.mxu0
    %v2906 = vadd.f32 %v2887, %v2905
    %v2907 = vpop.f32.mrf.mxu0
    %v2908 = vadd.f32 %v2889, %v2907
    %2909 = vmatmul.bf16.gmra.mxu0 %v1908
    %v2910 = vpop.f32.mrf.mxu0
    %v2911 = vadd.f32 %v2892, %v2910
    %v2912 = vpop.f32.mrf.mxu0
    %v2913 = vadd.f32 %v2894, %v2912
    %2914 = vdwg.mxu0
    %2915 = vmatpush.bf16.msra.mxu0 %v2462
    %2916 = vmatpush.bf16.msra.mxu0 %v2458
    %2917 = vmatpush.bf16.msra.mxu0 %v2454
    %2918 = vmatpush.bf16.msra.mxu0 %v2450
    %2919 = vmatpush.bf16.msra.mxu0 %v2446
    %2920 = vmatpush.bf16.msra.mxu0 %v2442
    %2921 = vmatpush.bf16.msra.mxu0 %v2438
    %2922 = vmatpush.bf16.msra.mxu0 %v2434
    %2923 = vmatmul.bf16.gmra.mxu0 %v1901
    %v2924 = vpop.f32.mrf.mxu0
    %v2925 = vadd.f32 %v2042, %v2924
    %v2926 = vpop.f32.mrf.mxu0
    %v2927 = vadd.f32 %v2042, %v2926
    %2928 = vmatmul.bf16.gmra.mxu0 %v1905
    %v2929 = vpop.f32.mrf.mxu0
    %v2930 = vadd.f32 %v2042, %v2929
    %v2931 = vpop.f32.mrf.mxu0
    %v2932 = vadd.f32 %v2042, %v2931
    %2933 = vdwg.mxu0
    %2934 = vmatpush.bf16.msra.mxu0 %v2494
    %2935 = vmatpush.bf16.msra.mxu0 %v2490
    %2936 = vmatpush.bf16.msra.mxu0 %v2486
    %2937 = vmatpush.bf16.msra.mxu0 %v2482
    %2938 = vmatpush.bf16.msra.mxu0 %v2478
    %2939 = vmatpush.bf16.msra.mxu0 %v2474
    %2940 = vmatpush.bf16.msra.mxu0 %v2470
    %2941 = vmatpush.bf16.msra.mxu0 %v2466
    %2942 = vmatmul.bf16.gmra.mxu0 %v1902
    %v2943 = vpop.f32.mrf.mxu0
    %v2944 = vadd.f32 %v2925, %v2943
    %v2945 = vpop.f32.mrf.mxu0
    %v2946 = vadd.f32 %v2927, %v2945
    %2947 = vmatmul.bf16.gmra.mxu0 %v1906
    %v2948 = vpop.f32.mrf.mxu0
    %v2949 = vadd.f32 %v2930, %v2948
    %v2950 = vpop.f32.mrf.mxu0
    %v2951 = vadd.f32 %v2932, %v2950
    %2952 = vdwg.mxu0
    %2953 = vmatpush.bf16.msra.mxu0 %v2526
    %2954 = vmatpush.bf16.msra.mxu0 %v2522
    %2955 = vmatpush.bf16.msra.mxu0 %v2518
    %2956 = vmatpush.bf16.msra.mxu0 %v2514
    %2957 = vmatpush.bf16.msra.mxu0 %v2510
    %2958 = vmatpush.bf16.msra.mxu0 %v2506
    %2959 = vmatpush.bf16.msra.mxu0 %v2502
    %2960 = vmatpush.bf16.msra.mxu0 %v2498
    %2961 = vmatmul.bf16.gmra.mxu0 %v1903
    %v2962 = vpop.f32.mrf.mxu0
    %v2963 = vadd.f32 %v2944, %v2962
    %v2964 = vpop.f32.mrf.mxu0
    %v2965 = vadd.f32 %v2946, %v2964
    %2966 = vmatmul.bf16.gmra.mxu0 %v1907
    %v2967 = vpop.f32.mrf.mxu0
    %v2968 = vadd.f32 %v2949, %v2967
    %v2969 = vpop.f32.mrf.mxu0
    %v2970 = vadd.f32 %v2951, %v2969
    %2971 = vdwg.mxu0
    %2972 = vmatpush.bf16.msra.mxu0 %v2558
    %2973 = vmatpush.bf16.msra.mxu0 %v2554
    %2974 = vmatpush.bf16.msra.mxu0 %v2550
    %2975 = vmatpush.bf16.msra.mxu0 %v2546
    %2976 = vmatpush.bf16.msra.mxu0 %v2542
    %2977 = vmatpush.bf16.msra.mxu0 %v2538
    %2978 = vmatpush.bf16.msra.mxu0 %v2534
    %2979 = vmatpush.bf16.msra.mxu0 %v2530
    %2980 = vmatmul.bf16.gmra.mxu0 %v1904
    %v2981 = vpop.f32.mrf.mxu0
    %v2982 = vadd.f32 %v2963, %v2981
    %v2983 = vpop.f32.mrf.mxu0
    %v2984 = vadd.f32 %v2965, %v2983
    %2985 = vmatmul.bf16.gmra.mxu0 %v1908
    %v2986 = vpop.f32.mrf.mxu0
    %v2987 = vadd.f32 %v2968, %v2986
    %v2988 = vpop.f32.mrf.mxu0
    %v2989 = vadd.f32 %v2970, %v2988
    %2990 = vdwg.mxu0
    %v2991 = vmax.f32 %v2754, 0.0
    %v2992 = vmax.f32 %v2830, 0.0
    %v2993 = vmax.f32 %v2906, 0.0
    %v2994 = vmax.f32 %v2982, 0.0
    %v2995 = vmax.f32 %v2756, 0.0
    %v2996 = vmax.f32 %v2832, 0.0
    %v2997 = vmax.f32 %v2908, 0.0
    %v2998 = vmax.f32 %v2984, 0.0
    %v2999 = vmax.f32 %v2759, 0.0
    %v3000 = vmax.f32 %v2835, 0.0
    %v3001 = vmax.f32 %v2911, 0.0
    %v3002 = vmax.f32 %v2987, 0.0
    %v3003 = vmax.f32 %v2761, 0.0
    %v3004 = vmax.f32 %v2837, 0.0
    %v3005 = vmax.f32 %v2913, 0.0
    %v3006 = vmax.f32 %v2989, 0.0
    %v3007 = vpack.c.bf16 %v2995, %v2991
    %v3008 = vpack.c.bf16 %v2996, %v2992
    %v3009 = vpack.c.bf16 %v2997, %v2993
    %v3010 = vpack.c.bf16 %v2998, %v2994
    %v3011 = vpack.c.bf16 %v3003, %v2999
    %v3012 = vpack.c.bf16 %v3004, %v3000
    %v3013 = vpack.c.bf16 %v3005, %v3001
    %v3014 = vpack.c.bf16 %v3006, %v3002
    %v3015 = vld [vmem:[#allocation11] sm:$0xf]
    %v3016 = vld [vmem:[#allocation11 + $0x4] sm:$0xf]
    %v3017 = vld [vmem:[#allocation11 + $0x8] sm:$0xf]
    %v3018 = vld [vmem:[#allocation11 + $0xc] sm:$0xf]
    %v3019 = vld [vmem:[#allocation11 + $0x10] sm:$0xf]
    %v3020 = vld [vmem:[#allocation11 + $0x14] sm:$0xf]
    %v3021 = vld [vmem:[#allocation11 + $0x18] sm:$0xf]
    %v3022 = vld [vmem:[#allocation11 + $0x1c] sm:$0xf]
    %v3023 = vld [vmem:[#allocation11 + $0x20] sm:$0xf]
    %v3024 = vld [vmem:[#allocation11 + $0x24] sm:$0xf]
    %v3025 = vld [vmem:[#allocation11 + $0x28] sm:$0xf]
    %v3026 = vld [vmem:[#allocation11 + $0x2c] sm:$0xf]
    %v3027 = vld [vmem:[#allocation11 + $0x30] sm:$0xf]
    %v3028 = vld [vmem:[#allocation11 + $0x34] sm:$0xf]
    %v3029 = vld [vmem:[#allocation11 + $0x38] sm:$0xf]
    %v3030 = vld [vmem:[#allocation11 + $0x3c] sm:$0xf]
    %v3031 = vld [vmem:[#allocation11 + $0x40] sm:$0xf]
    %v3032 = vld [vmem:[#allocation11 + $0x44] sm:$0xf]
    %v3033 = vld [vmem:[#allocation11 + $0x48] sm:$0xf]
    %v3034 = vld [vmem:[#allocation11 + $0x4c] sm:$0xf]
    %v3035 = vld [vmem:[#allocation11 + $0x50] sm:$0xf]
    %v3036 = vld [vmem:[#allocation11 + $0x54] sm:$0xf]
    %v3037 = vld [vmem:[#allocation11 + $0x58] sm:$0xf]
    %v3038 = vld [vmem:[#allocation11 + $0x5c] sm:$0xf]
    %v3039 = vld [vmem:[#allocation11 + $0x60] sm:$0xf]
    %v3040 = vld [vmem:[#allocation11 + $0x64] sm:$0xf]
    %v3041 = vld [vmem:[#allocation11 + $0x68] sm:$0xf]
    %v3042 = vld [vmem:[#allocation11 + $0x6c] sm:$0xf]
    %v3043 = vld [vmem:[#allocation11 + $0x70] sm:$0xf]
    %v3044 = vld [vmem:[#allocation11 + $0x74] sm:$0xf]
    %v3045 = vld [vmem:[#allocation11 + $0x78] sm:$0xf]
    %v3046 = vld [vmem:[#allocation11 + $0x7c] sm:$0xf]
    %v3047 = vld [vmem:[#allocation11 + $0x80] sm:$0xf]
    %v3048 = vld [vmem:[#allocation11 + $0x84] sm:$0xf]
    %v3049 = vld [vmem:[#allocation11 + $0x88] sm:$0xf]
    %v3050 = vld [vmem:[#allocation11 + $0x8c] sm:$0xf]
    %v3051 = vld [vmem:[#allocation11 + $0x90] sm:$0xf]
    %v3052 = vld [vmem:[#allocation11 + $0x94] sm:$0xf]
    %v3053 = vld [vmem:[#allocation11 + $0x98] sm:$0xf]
    %v3054 = vld [vmem:[#allocation11 + $0x9c] sm:$0xf]
    %v3055 = vld [vmem:[#allocation11 + $0xa0] sm:$0xf]
    %v3056 = vld [vmem:[#allocation11 + $0xa4] sm:$0xf]
    %v3057 = vld [vmem:[#allocation11 + $0xa8] sm:$0xf]
    %v3058 = vld [vmem:[#allocation11 + $0xac] sm:$0xf]
    %v3059 = vld [vmem:[#allocation11 + $0xb0] sm:$0xf]
    %v3060 = vld [vmem:[#allocation11 + $0xb4] sm:$0xf]
    %v3061 = vld [vmem:[#allocation11 + $0xb8] sm:$0xf]
    %v3062 = vld [vmem:[#allocation11 + $0xbc] sm:$0xf]
    %v3063 = vld [vmem:[#allocation11 + $0xc0] sm:$0xf]
    %v3064 = vld [vmem:[#allocation11 + $0xc4] sm:$0xf]
    %v3065 = vld [vmem:[#allocation11 + $0xc8] sm:$0xf]
    %v3066 = vld [vmem:[#allocation11 + $0xcc] sm:$0xf]
    %v3067 = vld [vmem:[#allocation11 + $0xd0] sm:$0xf]
    %v3068 = vld [vmem:[#allocation11 + $0xd4] sm:$0xf]
    %v3069 = vld [vmem:[#allocation11 + $0xd8] sm:$0xf]
    %v3070 = vld [vmem:[#allocation11 + $0xdc] sm:$0xf]
    %v3071 = vld [vmem:[#allocation11 + $0xe0] sm:$0xf]
    %v3072 = vld [vmem:[#allocation11 + $0xe4] sm:$0xf]
    %v3073 = vld [vmem:[#allocation11 + $0xe8] sm:$0xf]
    %v3074 = vld [vmem:[#allocation11 + $0xec] sm:$0xf]
    %v3075 = vld [vmem:[#allocation11 + $0xf0] sm:$0xf]
    %v3076 = vld [vmem:[#allocation11 + $0xf4] sm:$0xf]
    %v3077 = vld [vmem:[#allocation11 + $0xf8] sm:$0xf]
    %v3078 = vld [vmem:[#allocation11 + $0xfc] sm:$0xf]
    %v3079 = vld [vmem:[%s6] sm:$0x1]
    %v3081 = vperm.slane %v3079, 0
    %v3147 = vunpack.c.l.b16 %v3015
    %v3148 = vunpack.c.l.b16 %v3016
    %v3149 = vunpack.c.l.b16 %v3017
    %v3150 = vunpack.c.l.b16 %v3018
    %v3151 = vunpack.c.l.b16 %v3019
    %v3152 = vunpack.c.l.b16 %v3020
    %v3153 = vunpack.c.l.b16 %v3021
    %v3154 = vunpack.c.l.b16 %v3022
    %v3155 = vunpack.c.l.b16 %v3023
    %v3156 = vunpack.c.l.b16 %v3024
    %v3157 = vunpack.c.l.b16 %v3025
    %v3158 = vunpack.c.l.b16 %v3026
    %v3159 = vunpack.c.l.b16 %v3027
    %v3160 = vunpack.c.l.b16 %v3028
    %v3161 = vunpack.c.l.b16 %v3029
    %v3162 = vunpack.c.l.b16 %v3030
    %v3163 = vunpack.c.l.b16 %v3031
    %v3164 = vunpack.c.l.b16 %v3032
    %v3165 = vunpack.c.l.b16 %v3033
    %v3166 = vunpack.c.l.b16 %v3034
    %v3167 = vunpack.c.l.b16 %v3035
    %v3168 = vunpack.c.l.b16 %v3036
    %v3169 = vunpack.c.l.b16 %v3037
    %v3170 = vunpack.c.l.b16 %v3038
    %v3171 = vunpack.c.l.b16 %v3039
    %v3172 = vunpack.c.l.b16 %v3040
    %v3173 = vunpack.c.l.b16 %v3041
    %v3174 = vunpack.c.l.b16 %v3042
    %v3175 = vunpack.c.l.b16 %v3043
    %v3176 = vunpack.c.l.b16 %v3044
    %v3177 = vunpack.c.l.b16 %v3045
    %v3178 = vunpack.c.l.b16 %v3046
    %v3179 = vunpack.c.l.b16 %v3047
    %v3180 = vunpack.c.l.b16 %v3048
    %v3181 = vunpack.c.l.b16 %v3049
    %v3182 = vunpack.c.l.b16 %v3050
    %v3183 = vunpack.c.l.b16 %v3051
    %v3184 = vunpack.c.l.b16 %v3052
    %v3185 = vunpack.c.l.b16 %v3053
    %v3186 = vunpack.c.l.b16 %v3054
    %v3187 = vunpack.c.l.b16 %v3055
    %v3188 = vunpack.c.l.b16 %v3056
    %v3189 = vunpack.c.l.b16 %v3057
    %v3190 = vunpack.c.l.b16 %v3058
    %v3191 = vunpack.c.l.b16 %v3059
    %v3192 = vunpack.c.l.b16 %v3060
    %v3193 = vunpack.c.l.b16 %v3061
    %v3194 = vunpack.c.l.b16 %v3062
    %v3195 = vunpack.c.l.b16 %v3063
    %v3196 = vunpack.c.l.b16 %v3064
    %v3197 = vunpack.c.l.b16 %v3065
    %v3198 = vunpack.c.l.b16 %v3066
    %v3199 = vunpack.c.l.b16 %v3067
    %v3200 = vunpack.c.l.b16 %v3068
    %v3201 = vunpack.c.l.b16 %v3069
    %v3202 = vunpack.c.l.b16 %v3070
    %v3203 = vunpack.c.l.b16 %v3071
    %v3204 = vunpack.c.l.b16 %v3072
    %v3205 = vunpack.c.l.b16 %v3073
    %v3206 = vunpack.c.l.b16 %v3074
    %v3207 = vunpack.c.l.b16 %v3075
    %v3208 = vunpack.c.l.b16 %v3076
    %v3209 = vunpack.c.l.b16 %v3077
    %v3210 = vunpack.c.l.b16 %v3078
    %v3211 = vpack.c.b16 %v3148, %v3147
    %v3212 = vpack.c.b16 %v3150, %v3149
    %v3213 = vpack.c.b16 %v3152, %v3151
    %v3214 = vpack.c.b16 %v3154, %v3153
    %v3215 = vpack.c.b16 %v3156, %v3155
    %v3216 = vpack.c.b16 %v3158, %v3157
    %v3217 = vpack.c.b16 %v3160, %v3159
    %v3218 = vpack.c.b16 %v3162, %v3161
    %v3219 = vpack.c.b16 %v3164, %v3163
    %v3220 = vpack.c.b16 %v3166, %v3165
    %v3221 = vpack.c.b16 %v3168, %v3167
    %v3222 = vpack.c.b16 %v3170, %v3169
    %v3223 = vpack.c.b16 %v3172, %v3171
    %v3224 = vpack.c.b16 %v3174, %v3173
    %v3225 = vpack.c.b16 %v3176, %v3175
    %v3226 = vpack.c.b16 %v3178, %v3177
    %v3227 = vpack.c.b16 %v3180, %v3179
    %v3228 = vpack.c.b16 %v3182, %v3181
    %v3229 = vpack.c.b16 %v3184, %v3183
    %v3230 = vpack.c.b16 %v3186, %v3185
    %v3231 = vpack.c.b16 %v3188, %v3187
    %v3232 = vpack.c.b16 %v3190, %v3189
    %v3233 = vpack.c.b16 %v3192, %v3191
    %v3234 = vpack.c.b16 %v3194, %v3193
    %v3235 = vpack.c.b16 %v3196, %v3195
    %v3236 = vpack.c.b16 %v3198, %v3197
    %v3237 = vpack.c.b16 %v3200, %v3199
    %v3238 = vpack.c.b16 %v3202, %v3201
    %v3239 = vpack.c.b16 %v3204, %v3203
    %v3240 = vpack.c.b16 %v3206, %v3205
    %v3241 = vpack.c.b16 %v3208, %v3207
    %v3242 = vpack.c.b16 %v3210, %v3209
    %3275 = vmatpush.bf16.msra.mxu0 %v3218
    %3276 = vmatpush.bf16.msra.mxu0 %v3217
    %3277 = vmatpush.bf16.msra.mxu0 %v3216
    %3278 = vmatpush.bf16.msra.mxu0 %v3215
    %3279 = vmatpush.bf16.msra.mxu0 %v3214
    %3280 = vmatpush.bf16.msra.mxu0 %v3213
    %3281 = vmatpush.bf16.msra.mxu0 %v3212
    %3282 = vmatpush.bf16.msra.mxu0 %v3211
    %3283 = vmatmul.bf16.gmra.mxu0 %v3007
    %v3284 = vpop.f32.mrf.mxu0
    %v3285 = vadd.f32 %v3081, %v3284
    %v3286 = vpop.f32.mrf.mxu0
    %v3287 = vadd.f32 %v3081, %v3286
    %3288 = vmatmul.bf16.gmra.mxu0 %v3011
    %v3289 = vpop.f32.mrf.mxu0
    %v3290 = vadd.f32 %v3081, %v3289
    %v3291 = vpop.f32.mrf.mxu0
    %v3292 = vadd.f32 %v3081, %v3291
    %3293 = vdwg.mxu0
    %3294 = vmatpush.bf16.msra.mxu0 %v3226
    %3295 = vmatpush.bf16.msra.mxu0 %v3225
    %3296 = vmatpush.bf16.msra.mxu0 %v3224
    %3297 = vmatpush.bf16.msra.mxu0 %v3223
    %3298 = vmatpush.bf16.msra.mxu0 %v3222
    %3299 = vmatpush.bf16.msra.mxu0 %v3221
    %3300 = vmatpush.bf16.msra.mxu0 %v3220
    %3301 = vmatpush.bf16.msra.mxu0 %v3219
    %3302 = vmatmul.bf16.gmra.mxu0 %v3008
    %v3303 = vpop.f32.mrf.mxu0
    %v3304 = vadd.f32 %v3285, %v3303
    %v3305 = vpop.f32.mrf.mxu0
    %v3306 = vadd.f32 %v3287, %v3305
    %3307 = vmatmul.bf16.gmra.mxu0 %v3012
    %v3308 = vpop.f32.mrf.mxu0
    %v3309 = vadd.f32 %v3290, %v3308
    %v3310 = vpop.f32.mrf.mxu0
    %v3311 = vadd.f32 %v3292, %v3310
    %3312 = vdwg.mxu0
    %3313 = vmatpush.bf16.msra.mxu0 %v3234
    %3314 = vmatpush.bf16.msra.mxu0 %v3233
    %3315 = vmatpush.bf16.msra.mxu0 %v3232
    %3316 = vmatpush.bf16.msra.mxu0 %v3231
    %3317 = vmatpush.bf16.msra.mxu0 %v3230
    %3318 = vmatpush.bf16.msra.mxu0 %v3229
    %3319 = vmatpush.bf16.msra.mxu0 %v3228
    %3320 = vmatpush.bf16.msra.mxu0 %v3227
    %3321 = vmatmul.bf16.gmra.mxu0 %v3009
    %v3322 = vpop.f32.mrf.mxu0
    %v3323 = vadd.f32 %v3304, %v3322
    %v3324 = vpop.f32.mrf.mxu0
    %v3325 = vadd.f32 %v3306, %v3324
    %3326 = vmatmul.bf16.gmra.mxu0 %v3013
    %v3327 = vpop.f32.mrf.mxu0
    %v3328 = vadd.f32 %v3309, %v3327
    %v3329 = vpop.f32.mrf.mxu0
    %v3330 = vadd.f32 %v3311, %v3329
    %3331 = vdwg.mxu0
    %3332 = vmatpush.bf16.msra.mxu0 %v3242
    %3333 = vmatpush.bf16.msra.mxu0 %v3241
    %3334 = vmatpush.bf16.msra.mxu0 %v3240
    %3335 = vmatpush.bf16.msra.mxu0 %v3239
    %3336 = vmatpush.bf16.msra.mxu0 %v3238
    %3337 = vmatpush.bf16.msra.mxu0 %v3237
    %3338 = vmatpush.bf16.msra.mxu0 %v3236
    %3339 = vmatpush.bf16.msra.mxu0 %v3235
    %3340 = vmatmul.bf16.gmra.mxu0 %v3010
    %v3341 = vpop.f32.mrf.mxu0
    %v3342 = vadd.f32 %v3323, %v3341
    %v3343 = vpop.f32.mrf.mxu0
    %v3344 = vadd.f32 %v3325, %v3343
    %3345 = vmatmul.bf16.gmra.mxu0 %v3014
    %v3346 = vpop.f32.mrf.mxu0
    %v3347 = vadd.f32 %v3328, %v3346
    %v3348 = vpop.f32.mrf.mxu0
    %v3349 = vadd.f32 %v3330, %v3348
    %3350 = vdwg.mxu0
    %v3351 = vmax.f32 %v3342, 0.0
    %v3352 = vmax.f32 %v3344, 0.0
    %v3353 = vmax.f32 %v3347, 0.0
    %v3354 = vmax.f32 %v3349, 0.0
    %3355 = vst [vmem:[#allocation13] sm:$0xff] %v3351
    %3356 = vst [vmem:[#allocation13 + $0x8] sm:$0xff] %v3352
    %3357 = vst [vmem:[#allocation13 + $0x10] sm:$0xff] %v3353
    %3358 = vst [vmem:[#allocation13 + $0x18] sm:$0xff] %v3354
    // Predicated region
    $region54: #{tpu_custom_call.1} parent=1 // pred_check
      _
    $region55: #{tpu_custom_call.1} parent=1 // pred_check_branch
      %3360 = sbr.rel (0) target = $region57
    $region56: #{tpu_custom_call.1} parent=1 // pred_region
      %3362 = vsyncadd [#allocation4], 0
      %s3363 = sshll.u32 [#allocation13], 4
      %s3364 = int_to_ptr.vmem [resolvable:$true] %s3363
      %s3365 = sshll.u32 %s7, 4
      %s3366 = int_to_ptr.hbm [resolvable:$true] %s3365
      %3371 = dma.vmem_to_hbm [thread:$0]  %s3364, 512, %s3366, [#allocation4], 128, 128, 8
    $region57: #{tpu_custom_call.1} parent=1 // pred_fallthru
      _
    // Predicated region
    $region58: #{tpu_custom_call.1} parent=1 // pred_check
      _
    $region59: #{tpu_custom_call.1} parent=1 // pred_check_branch
      %3373 = sbr.rel (0) target = $region61
    $region60: #{tpu_custom_call.1} parent=1 // pred_region
      %3375 = dma.done [#allocation4], 512
    $region61: #{tpu_custom_call.1} parent=1 // pred_fallthru
      _
    %3376 = vsyncpa [#allocation3], 1
    %3377 = vsyncpa [#allocation6], 1
    %3378 = vsyncpa [#allocation9], 1
    %3379 = vsyncpa [#allocation12], 1
    %3380 = vsyncpa [#allocation4], 1

</llo_original>
